<compile_context>
chip_gen: v6e
topology: v6e:2x2x1
jax: 0.10.0
libtpu: 0.0.40
codegen_flags: <defaults>
</compile_context>

<pallas_src>
import jax
import jax.numpy as jnp
from jax import lax
from jax.experimental import pallas as pl
from jax.experimental.pallas import tpu as pltpu

_LANE = 128      # lane width: Cout is padded up to this for lane-dense stores
_SUB = 16        # sublane granularity for bf16 tiles


# ---------------------------------------------------------------------------
# Pallas kernel: fused (patches @ W1 + b1) -> LeakyReLU -> (@ W2 + b2) -> LeakyReLU
# ---------------------------------------------------------------------------
def _fused_kernel(p_ref, w1_ref, b1_ref, w2_ref, b2_ref, o_ref):
    # matmul 1 == per-phase ConvTranspose2d (sub-pixel im2col), BN1 folded into w1/b1.
    # bf16 operands, f32 accumulation on the MXU.
    h = jnp.dot(p_ref[...], w1_ref[...], preferred_element_type=jnp.float32)
    h = h.astype(jnp.bfloat16) + b1_ref[...]      # bf16 epilogue: packed VALU on v6e/v7x
    h = jnp.maximum(h, 0.2 * h)                   # LeakyReLU(0.2): mul+max only

    # matmul 2 == 1x1 Conv2d, BN2 folded into w2/b2.
    y = jnp.dot(h, w2_ref[...], preferred_element_type=jnp.float32)
    y = y.astype(jnp.bfloat16) + b2_ref[...]
    o_ref[...] = jnp.maximum(y, 0.2 * y)          # bf16 store: halves writeback bytes


def _fused_matmul_chain(patches, w1e, b1e, w2e, b2e):
    """patches: (P, M, K) bf16.  w1e: (P, K, Coutp) bf16.  Returns (P, M, Coutp) bf16."""
    P, M, K = patches.shape
    Coutp = w1e.shape[-1]

    # --- tile size along M.
    # Per-step pipeline overhead is ~0.35 us, so small Coutp wants big M tiles;
    # clamp by a VMEM budget with headroom for v7x (64 MiB per TC).
    weight_bytes = 2 * (K * Coutp * 2 + Coutp * Coutp * 2 + 2 * Coutp * 2)  # dbl-buffered
    per_row_bytes = 2 * K * 2 + 2 * Coutp * 2 + Coutp * 6  # patch/out dbl-buf + h bf16+f32
    budget = max(0, (30 << 20) - weight_bytes)
    tm_budget = max(_SUB, (budget // per_row_bytes) // _SUB * _SUB)
    max_tm = max(_SUB, min(max(512, (1 << 19) // Coutp), tm_budget) // _SUB * _SUB)

    m_up = pl.cdiv(M, _SUB) * _SUB
    tm = min(max_tm, m_up)
    # Prefer an exact divisor of M (no masked edge tile) but only when it is large;
    # a tiny divisor would explode the grid, so otherwise keep the big tile and let
    # Pallas mask the single ragged edge tile (no jnp.pad HBM pass in either case).
    best = 0
    for cand in range(tm, 0, -_SUB):
        if M % cand == 0:
            best = cand
            break
    if best >= min(tm, max(256, tm // 2)):
        tm = best
    grid_m = pl.cdiv(M, tm)

    accounted = weight_bytes + tm * per_row_bytes
    vmem_limit = int(min(max(2 * accounted, 16 << 20), 40 << 20))

    cost = pl.CostEstimate(
        flops=int(2 * P * M * Coutp * (K + Coutp)),
        transcendentals=0,
        bytes_accessed=int(patches.size * 2 + w1e.size * 2 + w2e.size * 2
                           + b1e.size * 2 + b2e.size * 2 + P * M * Coutp * 2),
    )

    return pl.pallas_call(
        _fused_kernel,
        out_shape=jax.ShapeDtypeStruct((P, M, Coutp), jnp.bfloat16),
        grid_spec=pltpu.PrefetchScalarGridSpec(
            num_scalar_prefetch=0,
            grid=(P, grid_m),
            in_specs=[
                pl.BlockSpec((None, tm, K), lambda ph, i: (ph, i, 0)),     # patch rows
                pl.BlockSpec((None, K, Coutp), lambda ph, i: (ph, 0, 0)),  # W1 (per phase)
                pl.BlockSpec((1, Coutp), lambda ph, i: (0, 0)),            # b1 (resident)
                pl.BlockSpec((Coutp, Coutp), lambda ph, i: (0, 0)),        # W2 (resident)
                pl.BlockSpec((1, Coutp), lambda ph, i: (0, 0)),            # b2 (resident)
            ],
            out_specs=pl.BlockSpec((None, tm, Coutp), lambda ph, i: (ph, i, 0)),
        ),
        compiler_params=pltpu.CompilerParams(
            dimension_semantics=("parallel", "parallel"),
            vmem_limit_bytes=vmem_limit,
        ),
        cost_estimate=cost,
    )(patches, w1e, b1e, w2e, b2e)


# ---------------------------------------------------------------------------
# JAX glue: sub-pixel decomposition, BN folding, NCHW <-> matrix layout
# ---------------------------------------------------------------------------
def conv_trans_bn_conv1(x, params):
    """x: (N, Cin, H, W) NCHW float32.  Returns (N, Cout, 2H, 2W) NCHW float32."""
    N, Cin, H, W = x.shape
    OH, OW = 2 * H, 2 * W
    eps = 1e-5

    wt = params["wt"]          # (Cin, Cout, 4, 4)  ConvTranspose2d weight
    bt = params["bt"]          # (Cout,)
    g1, be1, rm1, rv1 = params["g1"], params["be1"], params["rm1"], params["rv1"]
    w2 = params["w2"]          # (Cout, Cout, 1, 1) 1x1 Conv2d weight
    b2 = params["b2"]          # (Cout,)
    g2, be2, rm2, rv2 = params["g2"], params["be2"], params["rm2"], params["rv2"]
    Cout = wt.shape[1]
    Coutp = max(_LANE, pl.cdiv(Cout, _LANE) * _LANE)

    # --- sub-pixel decomposition of ConvTranspose2d(k=4, s=2, p=1):
    # output pixel (2*ry+dy, 2*rx+dx) reads the 2x2 input window starting at
    # (ry+dy-1, rx+dx-1) with kernel taps wt[c, o, 3-dy-2u, 3-dx-2v].
    # im2col slabs are built directly in bf16 (halves the HBM write of the slab).
    # TODO(synk): the (4, M, 4*Cin) im2col slab is still materialized in HBM; an
    # in-kernel halo gather would remove that extra pass on v5e but needs manual DMA.
    x_nhwc = x.transpose(0, 2, 3, 1).astype(jnp.bfloat16)       # single NCHW->NHWC transpose
    x_pad = jnp.pad(x_nhwc, ((0, 0), (1, 1), (1, 1), (0, 0)))
    patches = jnp.stack(
        [
            jnp.concatenate(
                [x_pad[:, dy + u:dy + u + H, dx + v:dx + v + W, :]
                 for u in (0, 1) for v in (0, 1)],
                axis=-1,
            )
            for dy in (0, 1) for dx in (0, 1)
        ],
        axis=0,
    ).reshape(4, N * H * W, 4 * Cin)                            # (phase, M, K=4*Cin) bf16

    # per-phase direct-conv weight: w1[dy*2+dx, (u*2+v)*Cin+c, o] = wt[c,o,3-dy-2u,3-dx-2v]
    wtt = wt.transpose(2, 3, 0, 1)                              # (kh, kw, Cin, Cout)
    tap = jnp.array([[3, 1], [2, 0]])                           # tap[d, u] = 3 - d - 2u
    w_ph = wtt[tap[:, None, :, None], tap[None, :, None, :]]    # (dy, dx, u, v, Cin, Cout)
    w1 = w_ph.reshape(4, 4 * Cin, Cout)

    # --- fold BatchNorm (inference mode: running stats) into the matmuls (f32 math)
    s1 = g1 / jnp.sqrt(rv1 + eps)
    w1e = w1 * s1[None, None, :]
    b1e = bt * s1 + (be1 - rm1 * s1)

    w2m = w2.reshape(Cout, Cout).T                              # (Cin2, Cout2)
    s2 = g2 / jnp.sqrt(rv2 + eps)
    w2e = w2m * s2[None, :]
    b2e = b2 * s2 + (be2 - rm2 * s2)

    # pad Cout to a lane-dense multiple of 128 (zero cols + zero bias -> padded
    # channels stay exactly 0 through both LeakyReLUs)
    pad_c = Coutp - Cout
    w1e = jnp.pad(w1e, ((0, 0), (0, 0), (0, pad_c)))
    b1e = jnp.pad(b1e, ((0, pad_c),)).reshape(1, Coutp)
    w2e = jnp.pad(w2e, ((0, pad_c), (0, pad_c)))
    b2e = jnp.pad(b2e, ((0, pad_c),)).reshape(1, Coutp)

    out = _fused_matmul_chain(
        patches,
        w1e.astype(jnp.bfloat16), b1e.astype(jnp.bfloat16),
        w2e.astype(jnp.bfloat16), b2e.astype(jnp.bfloat16),
    )                                                           # (4, N*H*W, Coutp) bf16

    # interleave the 4 phases back into NCHW with a single bf16 transpose,
    # cast to f32 only at the very end.
    y = out[:, :, :Cout].reshape(2, 2, N, H, W, Cout)           # (dy, dx, N, ry, rx, C)
    y = y.transpose(2, 5, 3, 0, 4, 1).reshape(N, Cout, OH, OW)  # (N, C, 2H, 2W)
    return y.astype(jnp.float32)


def _reference(x, params):
    """Plain-JAX f32 reference following the same math (for correctness check)."""
    N, Cin, H, W = x.shape
    eps = 1e-5
    wt, bt = params["wt"], params["bt"]
    Cout = wt.shape[1]
    w_conv = jnp.flip(wt, axis=(2, 3)).transpose(1, 0, 2, 3)
    y = lax.conv_general_dilated(
        x, w_conv, window_strides=(1, 1), padding=[(2, 2), (2, 2)],
        lhs_dilation=(2, 2), dimension_numbers=("NCHW", "OIHW", "NCHW"),
        precision=lax.Precision.HIGHEST,
    ) + bt[None, :, None, None]
    s1 = params["g1"] / jnp.sqrt(params["rv1"] + eps)
    y = (y - params["rm1"][None, :, None, None]) * s1[None, :, None, None] \
        + params["be1"][None, :, None, None]
    y = jnp.where(y > 0, y, 0.2 * y)
    w2m = params["w2"].reshape(Cout, Cout)
    y = jnp.einsum("nchw,oc->nohw", y, w2m, precision=lax.Precision.HIGHEST) \
        + params["b2"][None, :, None, None]
    s2 = params["g2"] / jnp.sqrt(params["rv2"] + eps)
    y = (y - params["rm2"][None, :, None, None]) * s2[None, :, None, None] \
        + params["be2"][None, :, None, None]
    return jnp.where(y > 0, y, 0.2 * y)


def init_params(key, in_c, out_c):
    ks = jax.random.split(key, 8)
    p = {
        "wt": 0.1 * jax.random.normal(ks[0], (in_c, out_c, 4, 4), jnp.float32),
        "bt": 0.1 * jax.random.normal(ks[1], (out_c,), jnp.float32),
        "g1": 1.0 + 0.1 * jax.random.normal(ks[2], (out_c,), jnp.float32),
        "be1": 0.1 * jax.random.normal(ks[3], (out_c,), jnp.float32),
        "rm1": 0.1 * jax.random.normal(ks[4], (out_c,), jnp.float32),
        "rv1": 1.0 + 0.1 * jax.random.uniform(ks[5], (out_c,), jnp.float32),
        "w2": 0.1 * jax.random.normal(ks[6], (out_c, out_c, 1, 1), jnp.float32),
        "b2": 0.1 * jax.random.normal(ks[7], (out_c,), jnp.float32),
        "g2": jnp.ones((out_c,), jnp.float32),
        "be2": jnp.zeros((out_c,), jnp.float32),
        "rm2": jnp.zeros((out_c,), jnp.float32),
        "rv2": jnp.ones((out_c,), jnp.float32),
    }
    # TODO(synk): BatchNorm2d is applied in inference mode (running stats); training-mode
    # batch statistics would need a cross-tile reduction and are not reproduced here.
    return p


if __name__ == "__main__":
    key = jax.random.PRNGKey(0)
    kx, kp = jax.random.split(key)

    N, in_c, out_c, H, W = 2, 4, 8, 16, 16
    x = jax.random.normal(kx, (N, in_c, H, W), jnp.float32)
    params = init_params(kp, in_c, out_c)

    fwd = jax.jit(conv_trans_bn_conv1)
    out = fwd(x, params)
    jax.block_until_ready(out)

    ref = _reference(x, params)
    assert out.shape == (N, out_c, 2 * H, 2 * W), out.shape
    # bf16 MXU operands, bf16 epilogues and bf16 kernel store vs f32-HIGHEST reference
    err = float(jnp.max(jnp.abs(out - ref)))
    assert jnp.allclose(out, ref, rtol=2.5e-2, atol=2.5e-2), err

    print("KERNEL_OK")
</pallas_src>

<mosaic_0001>
module attributes {stable_mosaic.version = 11 : i64} {
  func.func @_fused_kernel(%arg0: i32, %arg1: i32, %arg2: memref<1x512x16xbf16, #tpu.memory_space<vmem>>, %arg3: memref<1x16x128xbf16, #tpu.memory_space<vmem>>, %arg4: memref<1x128xbf16, #tpu.memory_space<vmem>>, %arg5: memref<128x128xbf16, #tpu.memory_space<vmem>>, %arg6: memref<1x128xbf16, #tpu.memory_space<vmem>>, %arg7: memref<1x512x128xbf16, #tpu.memory_space<vmem>>) attributes {dimension_semantics = [#tpu.dimension_semantics<parallel>, #tpu.dimension_semantics<parallel>], iteration_bounds = array<i64: 4, 1>, scalar_prefetch = 0 : i64, scratch_operands = 0 : i64, tpu.core_type = #tpu.core_type<tc>, window_params = [{transform_indices = @transform_0, window_bounds = array<i64: 1, 512, 16>}, {transform_indices = @transform_1, window_bounds = array<i64: 1, 16, 128>}, {pipeline_mode = #tpu.pipeline_mode<synchronous>, transform_indices = @transform_2, window_bounds = array<i64: 1, 128>}, {pipeline_mode = #tpu.pipeline_mode<synchronous>, transform_indices = @transform_3, window_bounds = array<i64: 128, 128>}, {pipeline_mode = #tpu.pipeline_mode<synchronous>, transform_indices = @transform_4, window_bounds = array<i64: 1, 128>}, {transform_indices = @transform_5, window_bounds = array<i64: 1, 512, 128>}]} {
    %c0 = arith.constant 0 : index
    %c0_0 = arith.constant 0 : index
    %c0_1 = arith.constant 0 : index
    %0 = vector.load %arg2[%c0, %c0_0, %c0_1] : memref<1x512x16xbf16, #tpu.memory_space<vmem>>, vector<1x512x16xbf16>
    %1 = vector.shape_cast %0 : vector<1x512x16xbf16> to vector<512x16xbf16>
    %c0_2 = arith.constant 0 : index
    %c0_3 = arith.constant 0 : index
    %c0_4 = arith.constant 0 : index
    %2 = vector.load %arg3[%c0_2, %c0_3, %c0_4] : memref<1x16x128xbf16, #tpu.memory_space<vmem>>, vector<1x16x128xbf16>
    %3 = vector.shape_cast %2 : vector<1x16x128xbf16> to vector<16x128xbf16>
    %cst = arith.constant dense<0.000000e+00> : vector<512x128xf32>
    %4 = tpu.matmul %1, %3, %cst {dimension_numbers = #tpu.dot_dimension_numbers<[1], [0], [0], [1], [0, 0, 1, 1], [], []>} : vector<512x16xbf16>, vector<16x128xbf16>, vector<512x128xf32> -> vector<512x128xf32>
    %5 = arith.truncf %4 : vector<512x128xf32> to vector<512x128xbf16>
    %c0_5 = arith.constant 0 : index
    %c0_6 = arith.constant 0 : index
    %6 = vector.load %arg4[%c0_5, %c0_6] : memref<1x128xbf16, #tpu.memory_space<vmem>>, vector<1x128xbf16>
    %7 = vector.broadcast %6 : vector<1x128xbf16> to vector<512x128xbf16>
    %8 = arith.addf %5, %7 : vector<512x128xbf16>
    %cst_7 = arith.constant 2.001950e-01 : bf16
    %9 = vector.broadcast %cst_7 : bf16 to vector<512x128xbf16>
    %10 = arith.mulf %9, %8 : vector<512x128xbf16>
    %11 = arith.maximumf %8, %10 : vector<512x128xbf16>
    %c0_8 = arith.constant 0 : index
    %c0_9 = arith.constant 0 : index
    %12 = vector.load %arg5[%c0_8, %c0_9] : memref<128x128xbf16, #tpu.memory_space<vmem>>, vector<128x128xbf16>
    %cst_10 = arith.constant dense<0.000000e+00> : vector<512x128xf32>
    %13 = tpu.matmul %11, %12, %cst_10 {dimension_numbers = #tpu.dot_dimension_numbers<[1], [0], [0], [1], [0, 0, 1, 1], [], []>} : vector<512x128xbf16>, vector<128x128xbf16>, vector<512x128xf32> -> vector<512x128xf32>
    %14 = arith.truncf %13 : vector<512x128xf32> to vector<512x128xbf16>
    %c0_11 = arith.constant 0 : index
    %c0_12 = arith.constant 0 : index
    %15 = vector.load %arg6[%c0_11, %c0_12] : memref<1x128xbf16, #tpu.memory_space<vmem>>, vector<1x128xbf16>
    %16 = vector.broadcast %15 : vector<1x128xbf16> to vector<512x128xbf16>
    %17 = arith.addf %14, %16 : vector<512x128xbf16>
    %cst_13 = arith.constant 2.001950e-01 : bf16
    %18 = vector.broadcast %cst_13 : bf16 to vector<512x128xbf16>
    %19 = arith.mulf %18, %17 : vector<512x128xbf16>
    %20 = arith.maximumf %17, %19 : vector<512x128xbf16>
    %c0_14 = arith.constant 0 : index
    %c0_15 = arith.constant 0 : index
    %c0_16 = arith.constant 0 : index
    %21 = vector.load %arg7[%c0_14, %c0_15, %c0_16] : memref<1x512x128xbf16, #tpu.memory_space<vmem>>, vector<1x512x128xbf16>
    %22 = vector.shape_cast %21 : vector<1x512x128xbf16> to vector<512x128xbf16>
    %23 = vector.shape_cast %20 : vector<512x128xbf16> to vector<1x512x128xbf16>
    tpu.vector_store %arg7[%c0_14, %c0_15, %c0_16], %23 {strides = array<i32>} : memref<1x512x128xbf16, #tpu.memory_space<vmem>>, vector<1x512x128xbf16>,
    return
  }
  func.func @transform_0(%arg0: i32, %arg1: i32) -> (i32, i32, i32) {
    %c0_i32 = arith.constant 0 : i32
    %c0_i32_0 = arith.constant 0 : i32
    return %arg0, %arg1, %c0_i32 : i32, i32, i32
  }
  func.func @transform_1(%arg0: i32, %arg1: i32) -> (i32, i32, i32) {
    %c0_i32 = arith.constant 0 : i32
    %c0_i32_0 = arith.constant 0 : i32
    %c0_i32_1 = arith.constant 0 : i32
    return %arg0, %c0_i32, %c0_i32_0 : i32, i32, i32
  }
  func.func @transform_2(%arg0: i32, %arg1: i32) -> (i32, i32) {
    %c0_i32 = arith.constant 0 : i32
    %c0_i32_0 = arith.constant 0 : i32
    %c0_i32_1 = arith.constant 0 : i32
    return %c0_i32, %c0_i32_0 : i32, i32
  }
  func.func @transform_3(%arg0: i32, %arg1: i32) -> (i32, i32) {
    %c0_i32 = arith.constant 0 : i32
    %c0_i32_0 = arith.constant 0 : i32
    %c0_i32_1 = arith.constant 0 : i32
    return %c0_i32, %c0_i32_0 : i32, i32
  }
  func.func @transform_4(%arg0: i32, %arg1: i32) -> (i32, i32) {
    %c0_i32 = arith.constant 0 : i32
    %c0_i32_0 = arith.constant 0 : i32
    %c0_i32_1 = arith.constant 0 : i32
    return %c0_i32, %c0_i32_0 : i32, i32
  }
  func.func @transform_5(%arg0: i32, %arg1: i32) -> (i32, i32, i32) {
    %c0_i32 = arith.constant 0 : i32
    %c0_i32_0 = arith.constant 0 : i32
    return %arg0, %arg1, %c0_i32 : i32, i32, i32
  }
}

</mosaic_0001>

<llo_original>
// kernel: conv_trans_bn_conv1.1
$region0: #{conv_trans_bn_conv1.1}
  #allocation0 [shape = 'u32[]', space=smem, size = 0x4, offset = 0x4, fixed_abs, tag = 'smem constant byte address 0x4 - core index']
  #allocation1 [shape = 'u32[144,128]{1,0:T(1,128)}', space=vmem, size = 0x12000, scoped, tag = 'internal scratch']
  %s0 = inlined_call_operand.vmem [shape: bf16[4,512,16], index: 0, kind: input, shape index: {}]
  %s1 = inlined_call_operand.vmem [shape: bf16[4,16,128], index: 1, kind: input, shape index: {}]
  %s2 = inlined_call_operand.vmem [shape: bf16[1,128], index: 2, kind: input, shape index: {}]
  %s3 = inlined_call_operand.vmem [shape: bf16[128,128], index: 3, kind: input, shape index: {}]
  %s4 = inlined_call_operand.vmem [shape: bf16[1,128], index: 4, kind: input, shape index: {}]
  %s5 = inlined_call_operand.vmem [shape: bf16[4,512,128], index: 5, kind: output, shape index: {}]
  %s6 = sld [smem:[#allocation0]]
  $region53: #{conv_trans_bn_conv1.1} parent=0
    _
  %s8 = ssub.s32 1, %s6
  %s9 = scalar_select 0, %s8, %s6
  loop: start=0, step=1, limit=6
  $region2: #{conv_trans_bn_conv1.1} parent=0 // loop_pre_header
    _
  $region3: #{conv_trans_bn_conv1.1} parent=0 // loop_header
    %s11 = sphi 0, %s15
    %p12 = scmp.ge.s32.totalorder %s11, 6
    %s18 = sphi 0, %s30
    %s19 = sphi 0, %s26
    %s20 = sphi 0, %s18
    %s21 = sphi 0, %s19
    %s22 = sphi 0, %s20
    %s23 = sphi 0, %s21
    %s35 = sphi 0, %s37
    %s38 = sphi 0, %s35
    %s39 = sphi 0, %s38
    %s55 = sphi 0, %s39
    %s61 = sphi 0, %s63
    %s64 = sphi 0, %s61
    %s65 = sphi 0, %s64
    %s81 = sphi 0, %s65
    %s85 = sphi 0, %s85
    %s87 = sphi 0, %s85
    %s88 = sphi 0, %s87
    %s102 = sphi 0, %s88
    %s106 = sphi 0, %s106
    %s108 = sphi 0, %s106
    %s109 = sphi 0, %s108
    %s123 = sphi 0, %s109
    %s127 = sphi 0, %s127
    %s129 = sphi 0, %s127
    %s130 = sphi 0, %s129
    %s144 = sphi 0, %s130
    %s152 = sphi 0, %s154
    %s155 = sphi 0, %s152
    %s156 = sphi 0, %s155
    %s172 = sphi 0, %s156
  $region4: #{conv_trans_bn_conv1.1} parent=0 // loop_header_branch
    %14 = sbr.rel (%p12) target = $region8
  $region5: #{conv_trans_bn_conv1.1} parent=0 // loop_body
    %s16 = ssub.s32 %s11, 1
    %s17 = ssub.s32 %s11, 2
    %s24 = sadd.s32 1, %s19
    %p25 = scmp.ge.s32.totalorder %s24, 1
    %s26 = scalar_select %p25, 0, %s24
    %s27 = sadd.s32 1, %s18
    %s28 = scalar_select %p25, %s27, %s18
    %p29 = scmp.ge.s32.totalorder %s28, 4
    %s30 = scalar_select %p29, 0, %s28
    %s31 = ssub.s32 %s18, %s30
    %s32 = ssub.s32 %s19, %s26
    %s33 = sor.u32 %s31, %s32
    %p34 = scmp.eq.s32.totalorder %s33, 0
    %s36 = sadd.s32 %s35, 1
    %s37 = scalar_select %p34, %s35, %s36
    %p40 = pneg %p34
    %p41 = scmp.eq.s32.totalorder %s11, 3
    %p42 = por %p40, %p41
    %p43 = scmp.ne.s32.totalorder %s35, %s38
    %p44 = scmp.eq.s32.totalorder %s11, 0
    %p45 = por %p43, %p44
    %p46 = scmp.ne.s32.totalorder %s35, %s38
    %p47 = scmp.eq.s32.totalorder %s16, 3
    %p48 = por %p46, %p47
    %p49 = scmp.ne.s32.totalorder %s38, %s39
    %p50 = scmp.eq.s32.totalorder %s16, 0
    %p51 = por %p49, %p50
    %p52 = scmp.ne.s32.totalorder %s38, %s39
    %p53 = scmp.eq.s32.totalorder %s17, 3
    %p54 = por %p52, %p53
    %p56 = scmp.ne.s32.totalorder %s39, %s55
    %p57 = scmp.eq.s32.totalorder %s17, 0
    %p58 = por %p56, %p57
    %s59 = ssub.s32 %s18, %s30
    %p60 = scmp.eq.s32.totalorder %s59, 0
    %s62 = sadd.s32 %s61, 1
    %s63 = scalar_select %p60, %s61, %s62
    %p66 = pneg %p60
    %p67 = scmp.eq.s32.totalorder %s11, 3
    %p68 = por %p66, %p67
    %p69 = scmp.ne.s32.totalorder %s61, %s64
    %p70 = scmp.eq.s32.totalorder %s11, 0
    %p71 = por %p69, %p70
    %p72 = scmp.ne.s32.totalorder %s61, %s64
    %p73 = scmp.eq.s32.totalorder %s16, 3
    %p74 = por %p72, %p73
    %p75 = scmp.ne.s32.totalorder %s64, %s65
    %p76 = scmp.eq.s32.totalorder %s16, 0
    %p77 = por %p75, %p76
    %p78 = scmp.ne.s32.totalorder %s64, %s65
    %p79 = scmp.eq.s32.totalorder %s17, 3
    %p80 = por %p78, %p79
    %p82 = scmp.ne.s32.totalorder %s65, %s81
    %p83 = scmp.eq.s32.totalorder %s17, 0
    %p84 = por %p82, %p83
    %s86 = sadd.s32 %s85, 1
    %p89 = scmp.eq.s32.totalorder %s11, 3
    %p90 = scmp.ne.s32.totalorder %s85, %s87
    %p91 = scmp.eq.s32.totalorder %s11, 0
    %p92 = por %p90, %p91
    %p93 = scmp.ne.s32.totalorder %s85, %s87
    %p94 = scmp.eq.s32.totalorder %s16, 3
    %p95 = por %p93, %p94
    %p96 = scmp.ne.s32.totalorder %s87, %s88
    %p97 = scmp.eq.s32.totalorder %s16, 0
    %p98 = por %p96, %p97
    %p99 = scmp.ne.s32.totalorder %s87, %s88
    %p100 = scmp.eq.s32.totalorder %s17, 3
    %p101 = por %p99, %p100
    %p103 = scmp.ne.s32.totalorder %s88, %s102
    %p104 = scmp.eq.s32.totalorder %s17, 0
    %p105 = por %p103, %p104
    %s107 = sadd.s32 %s106, 1
    %p110 = scmp.eq.s32.totalorder %s11, 3
    %p111 = scmp.ne.s32.totalorder %s106, %s108
    %p112 = scmp.eq.s32.totalorder %s11, 0
    %p113 = por %p111, %p112
    %p114 = scmp.ne.s32.totalorder %s106, %s108
    %p115 = scmp.eq.s32.totalorder %s16, 3
    %p116 = por %p114, %p115
    %p117 = scmp.ne.s32.totalorder %s108, %s109
    %p118 = scmp.eq.s32.totalorder %s16, 0
    %p119 = por %p117, %p118
    %p120 = scmp.ne.s32.totalorder %s108, %s109
    %p121 = scmp.eq.s32.totalorder %s17, 3
    %p122 = por %p120, %p121
    %p124 = scmp.ne.s32.totalorder %s109, %s123
    %p125 = scmp.eq.s32.totalorder %s17, 0
    %p126 = por %p124, %p125
    %s128 = sadd.s32 %s127, 1
    %p131 = scmp.eq.s32.totalorder %s11, 3
    %p132 = scmp.ne.s32.totalorder %s127, %s129
    %p133 = scmp.eq.s32.totalorder %s11, 0
    %p134 = por %p132, %p133
    %p135 = scmp.ne.s32.totalorder %s127, %s129
    %p136 = scmp.eq.s32.totalorder %s16, 3
    %p137 = por %p135, %p136
    %p138 = scmp.ne.s32.totalorder %s129, %s130
    %p139 = scmp.eq.s32.totalorder %s16, 0
    %p140 = por %p138, %p139
    %p141 = scmp.ne.s32.totalorder %s129, %s130
    %p142 = scmp.eq.s32.totalorder %s17, 3
    %p143 = por %p141, %p142
    %p145 = scmp.ne.s32.totalorder %s130, %s144
    %p146 = scmp.eq.s32.totalorder %s17, 0
    %p147 = por %p145, %p146
    %s148 = ssub.s32 %s18, %s30
    %s149 = ssub.s32 %s19, %s26
    %s150 = sor.u32 %s148, %s149
    %p151 = scmp.eq.s32.totalorder %s150, 0
    %s153 = sadd.s32 %s152, 1
    %s154 = scalar_select %p151, %s152, %s153
    %p157 = pneg %p151
    %p158 = scmp.eq.s32.totalorder %s11, 3
    %p159 = por %p157, %p158
    %p160 = scmp.ne.s32.totalorder %s152, %s155
    %p161 = scmp.eq.s32.totalorder %s11, 0
    %p162 = por %p160, %p161
    %p163 = scmp.ne.s32.totalorder %s152, %s155
    %p164 = scmp.eq.s32.totalorder %s16, 3
    %p165 = por %p163, %p164
    %p166 = scmp.ne.s32.totalorder %s155, %s156
    %p167 = scmp.eq.s32.totalorder %s16, 0
    %p168 = por %p166, %p167
    %p169 = scmp.ne.s32.totalorder %s155, %s156
    %p170 = scmp.eq.s32.totalorder %s17, 3
    %p171 = por %p169, %p170
    %p173 = scmp.ne.s32.totalorder %s156, %s172
    %p174 = scmp.eq.s32.totalorder %s17, 0
    %p175 = por %p173, %p174
    %p176 = scmp.le.s32.totalorder 1, %s11
    %p177 = scmp.lt.s32.totalorder %s11, 5
    %p178 = pnand %p176, %p177
    %p179 = pneg %p178
    // Predicated region
    $region9: #{conv_trans_bn_conv1.1} parent=5 // pred_check
      _
    $region10: #{conv_trans_bn_conv1.1} parent=5 // pred_check_branch
      %181 = sbr.rel (%p178) target = $region12
    $region11: #{conv_trans_bn_conv1.1} parent=5 // pred_region
      %s182 = ssub.s32 %s11, 1
      // Predicated region
      $region13: #{conv_trans_bn_conv1.1} parent=11 // pred_check
        %p183 = pneg %p98
      $region14: #{conv_trans_bn_conv1.1} parent=11 // pred_check_branch
        %185 = sbr.rel (%p183) target = $region16
      $region15: #{conv_trans_bn_conv1.1} parent=11 // pred_region
        _
      $region16: #{conv_trans_bn_conv1.1} parent=11 // pred_fallthru
        _
      // Predicated region
      $region17: #{conv_trans_bn_conv1.1} parent=11 // pred_check
        %p186 = pneg %p119
      $region18: #{conv_trans_bn_conv1.1} parent=11 // pred_check_branch
        %188 = sbr.rel (%p186) target = $region20
      $region19: #{conv_trans_bn_conv1.1} parent=11 // pred_region
        _
      $region20: #{conv_trans_bn_conv1.1} parent=11 // pred_fallthru
        _
      // Predicated region
      $region21: #{conv_trans_bn_conv1.1} parent=11 // pred_check
        %p189 = pneg %p140
      $region22: #{conv_trans_bn_conv1.1} parent=11 // pred_check_branch
        %191 = sbr.rel (%p189) target = $region24
      $region23: #{conv_trans_bn_conv1.1} parent=11 // pred_region
        _
      $region24: #{conv_trans_bn_conv1.1} parent=11 // pred_fallthru
        _
    $region12: #{conv_trans_bn_conv1.1} parent=5 // pred_fallthru
      _
    %p192 = scmp.lt.s32.totalorder %s11, 4
    // Predicated region
    $region25: #{conv_trans_bn_conv1.1} parent=5 // pred_check
      %p193 = pneg %p192
    $region26: #{conv_trans_bn_conv1.1} parent=5 // pred_check_branch
      %195 = sbr.rel (%p193) target = $region28
    $region27: #{conv_trans_bn_conv1.1} parent=5 // pred_region
      // Predicated region
      $region29: #{conv_trans_bn_conv1.1} parent=27 // pred_check
        %p196 = pneg %p45
      $region30: #{conv_trans_bn_conv1.1} parent=27 // pred_check_branch
        %198 = sbr.rel (%p196) target = $region32
      $region31: #{conv_trans_bn_conv1.1} parent=27 // pred_region
        %s199 = smul.u32 64, %s19
        %p200 = scmp.lt.s32.totalorder %s18, 3
        %s201 = scalar_select %p200, %s18, 3
        %p202 = scmp.lt.s32.totalorder %s199, 63
        %s203 = scalar_select %p202, %s199, 63
        %s204 = smul.addr %s201, 64
        %s205 = sadd.s32 %s203, %s204
        %s206 = smul.addr %s205, 4
        %s207 = scalar_lea.vmem %s0, %s206
        %s208 = smul.u32 64, %s19
      $region32: #{conv_trans_bn_conv1.1} parent=27 // pred_fallthru
        _
      // Predicated region
      $region33: #{conv_trans_bn_conv1.1} parent=27 // pred_check
        %p209 = pneg %p71
      $region34: #{conv_trans_bn_conv1.1} parent=27 // pred_check_branch
        %211 = sbr.rel (%p209) target = $region36
      $region35: #{conv_trans_bn_conv1.1} parent=27 // pred_region
        %p212 = scmp.lt.s32.totalorder %s18, 3
        %s213 = scalar_select %p212, %s18, 3
        %s214 = smul.addr %s213, 2
        %s215 = smul.addr %s214, 4
        %s216 = scalar_lea.vmem %s1, %s215
      $region36: #{conv_trans_bn_conv1.1} parent=27 // pred_fallthru
        _
    $region28: #{conv_trans_bn_conv1.1} parent=5 // pred_fallthru
      _
    %p217 = scmp.le.s32.totalorder 1, %s11
    %p218 = scmp.lt.s32.totalorder %s11, 5
    %p219 = pnand %p217, %p218
    %p220 = pneg %p219
    // Predicated region
    $region37: #{conv_trans_bn_conv1.1} parent=5 // pred_check
      _
    $region38: #{conv_trans_bn_conv1.1} parent=5 // pred_check_branch
      %222 = sbr.rel (%p219) target = $region40
    $region39: #{conv_trans_bn_conv1.1} parent=5 // pred_region
      %s223 = ssub.s32 %s11, 1
      %s224 = smul.u32 64, %s21
      %p225 = scmp.lt.s32.totalorder %s20, 3
      %s226 = scalar_select %p225, %s20, 3
      %p227 = scmp.lt.s32.totalorder %s224, 63
      %s228 = scalar_select %p227, %s224, 63
      %s229 = smul.addr %s226, 64
      %s230 = sadd.s32 %s228, %s229
      %s231 = smul.addr %s230, 4
      %s232 = scalar_lea.vmem %s0, %s231
      %p233 = pneg %p51
      %p234 = pneg %p48
      %p235 = scmp.lt.s32.totalorder %s20, 3
      %s236 = scalar_select %p235, %s20, 3
      %s237 = smul.addr %s236, 2
      %s238 = smul.addr %s237, 4
      %s239 = scalar_lea.vmem %s1, %s238
      %p240 = pneg %p77
      %p241 = pneg %p74
      %p242 = pneg %p98
      %p243 = pneg %p95
      %p244 = pneg %p119
      %p245 = pneg %p116
      %p246 = pneg %p140
      %p247 = pneg %p137
      %p248 = pneg %p168
      %p249 = pneg %p165
      %s250 = smul.u32 64, %s21
      %p251 = scmp.lt.s32.totalorder %s20, 3
      %s252 = scalar_select %p251, %s20, 3
      %p253 = scmp.lt.s32.totalorder %s250, 63
      %s254 = scalar_select %p253, %s250, 63
      %s255 = smul.addr %s252, 64
      %s256 = sadd.s32 %s254, %s255
      %s257 = smul.addr %s256, 4
      %s258 = scalar_lea.vmem %s5, %s257
      %s259 = smul.u32 64, %s21
      %p260 = scmp.lt.s32.totalorder %s20, 3
      %s261 = scalar_select %p260, %s20, 3
      %p262 = scmp.lt.s32.totalorder %s259, 63
      %s263 = scalar_select %p262, %s259, 63
      %s264 = smul.addr %s261, 64
      %s265 = sadd.s32 %s263, %s264
      %s266 = smul.addr %s265, 4
      %s267 = scalar_lea.vmem %s0, %s266
      %s268 = smul.u32 64, %s21
      %p269 = scmp.lt.s32.totalorder %s20, 3
      %s270 = scalar_select %p269, %s20, 3
      %s271 = smul.addr %s270, 2
      %s272 = smul.addr %s271, 4
      %s273 = scalar_lea.vmem %s1, %s272
      %s274 = smul.u32 64, %s21
      %p275 = scmp.lt.s32.totalorder %s20, 3
      %s276 = scalar_select %p275, %s20, 3
      %p277 = scmp.lt.s32.totalorder %s274, 63
      %s278 = scalar_select %p277, %s274, 63
      %s279 = smul.addr %s276, 64
      %s280 = sadd.s32 %s278, %s279
      %s281 = smul.addr %s280, 4
      %s282 = scalar_lea.vmem %s5, %s281
      %s283 = smul.u32 64, %s21
      %v286 = vld [vmem:[%s267] sm:$0xf]
      %v287 = vld [vmem:[%s267 + $0x4] sm:$0xf]
      %v288 = vld [vmem:[%s267 + $0x8] sm:$0xf]
      %v289 = vld [vmem:[%s267 + $0xc] sm:$0xf]
      %v290 = vld [vmem:[%s267 + $0x10] sm:$0xf]
      %v291 = vld [vmem:[%s267 + $0x14] sm:$0xf]
      %v292 = vld [vmem:[%s267 + $0x18] sm:$0xf]
      %v293 = vld [vmem:[%s267 + $0x1c] sm:$0xf]
      %v294 = vld [vmem:[%s267 + $0x20] sm:$0xf]
      %v295 = vld [vmem:[%s267 + $0x24] sm:$0xf]
      %v296 = vld [vmem:[%s267 + $0x28] sm:$0xf]
      %v297 = vld [vmem:[%s267 + $0x2c] sm:$0xf]
      %v298 = vld [vmem:[%s267 + $0x30] sm:$0xf]
      %v299 = vld [vmem:[%s267 + $0x34] sm:$0xf]
      %v300 = vld [vmem:[%s267 + $0x38] sm:$0xf]
      %v301 = vld [vmem:[%s267 + $0x3c] sm:$0xf]
      %v302 = vld [vmem:[%s267 + $0x40] sm:$0xf]
      %v303 = vld [vmem:[%s267 + $0x44] sm:$0xf]
      %v304 = vld [vmem:[%s267 + $0x48] sm:$0xf]
      %v305 = vld [vmem:[%s267 + $0x4c] sm:$0xf]
      %v306 = vld [vmem:[%s267 + $0x50] sm:$0xf]
      %v307 = vld [vmem:[%s267 + $0x54] sm:$0xf]
      %v308 = vld [vmem:[%s267 + $0x58] sm:$0xf]
      %v309 = vld [vmem:[%s267 + $0x5c] sm:$0xf]
      %v310 = vld [vmem:[%s267 + $0x60] sm:$0xf]
      %v311 = vld [vmem:[%s267 + $0x64] sm:$0xf]
      %v312 = vld [vmem:[%s267 + $0x68] sm:$0xf]
      %v313 = vld [vmem:[%s267 + $0x6c] sm:$0xf]
      %v314 = vld [vmem:[%s267 + $0x70] sm:$0xf]
      %v315 = vld [vmem:[%s267 + $0x74] sm:$0xf]
      %v316 = vld [vmem:[%s267 + $0x78] sm:$0xf]
      %v317 = vld [vmem:[%s267 + $0x7c] sm:$0xf]
      %v318 = vld [vmem:[%s267 + $0x80] sm:$0xf]
      %v319 = vld [vmem:[%s267 + $0x84] sm:$0xf]
      %v320 = vld [vmem:[%s267 + $0x88] sm:$0xf]
      %v321 = vld [vmem:[%s267 + $0x8c] sm:$0xf]
      %v322 = vld [vmem:[%s267 + $0x90] sm:$0xf]
      %v323 = vld [vmem:[%s267 + $0x94] sm:$0xf]
      %v324 = vld [vmem:[%s267 + $0x98] sm:$0xf]
      %v325 = vld [vmem:[%s267 + $0x9c] sm:$0xf]
      %v326 = vld [vmem:[%s267 + $0xa0] sm:$0xf]
      %v327 = vld [vmem:[%s267 + $0xa4] sm:$0xf]
      %v328 = vld [vmem:[%s267 + $0xa8] sm:$0xf]
      %v329 = vld [vmem:[%s267 + $0xac] sm:$0xf]
      %v330 = vld [vmem:[%s267 + $0xb0] sm:$0xf]
      %v331 = vld [vmem:[%s267 + $0xb4] sm:$0xf]
      %v332 = vld [vmem:[%s267 + $0xb8] sm:$0xf]
      %v333 = vld [vmem:[%s267 + $0xbc] sm:$0xf]
      %v334 = vld [vmem:[%s267 + $0xc0] sm:$0xf]
      %v335 = vld [vmem:[%s267 + $0xc4] sm:$0xf]
      %v336 = vld [vmem:[%s267 + $0xc8] sm:$0xf]
      %v337 = vld [vmem:[%s267 + $0xcc] sm:$0xf]
      %v338 = vld [vmem:[%s267 + $0xd0] sm:$0xf]
      %v339 = vld [vmem:[%s267 + $0xd4] sm:$0xf]
      %v340 = vld [vmem:[%s267 + $0xd8] sm:$0xf]
      %v341 = vld [vmem:[%s267 + $0xdc] sm:$0xf]
      %v342 = vld [vmem:[%s267 + $0xe0] sm:$0xf]
      %v343 = vld [vmem:[%s267 + $0xe4] sm:$0xf]
      %v344 = vld [vmem:[%s267 + $0xe8] sm:$0xf]
      %v345 = vld [vmem:[%s267 + $0xec] sm:$0xf]
      %v346 = vld [vmem:[%s267 + $0xf0] sm:$0xf]
      %v347 = vld [vmem:[%s267 + $0xf4] sm:$0xf]
      %v348 = vld [vmem:[%s267 + $0xf8] sm:$0xf]
      %v349 = vld [vmem:[%s267 + $0xfc] sm:$0xf]
      %v350 = vld [vmem:[%s273] sm:$0xf]
      %v351 = vld [vmem:[%s273 + $0x4] sm:$0xf]
      %v416 = vunpack.c.l.b16 %v286
      %v417 = vunpack.c.l.b16 %v287
      %v418 = vunpack.c.l.b16 %v288
      %v419 = vunpack.c.l.b16 %v289
      %v420 = vunpack.c.l.b16 %v290
      %v421 = vunpack.c.l.b16 %v291
      %v422 = vunpack.c.l.b16 %v292
      %v423 = vunpack.c.l.b16 %v293
      %v424 = vunpack.c.l.b16 %v294
      %v425 = vunpack.c.l.b16 %v295
      %v426 = vunpack.c.l.b16 %v296
      %v427 = vunpack.c.l.b16 %v297
      %v428 = vunpack.c.l.b16 %v298
      %v429 = vunpack.c.l.b16 %v299
      %v430 = vunpack.c.l.b16 %v300
      %v431 = vunpack.c.l.b16 %v301
      %v432 = vunpack.c.l.b16 %v302
      %v433 = vunpack.c.l.b16 %v303
      %v434 = vunpack.c.l.b16 %v304
      %v435 = vunpack.c.l.b16 %v305
      %v436 = vunpack.c.l.b16 %v306
      %v437 = vunpack.c.l.b16 %v307
      %v438 = vunpack.c.l.b16 %v308
      %v439 = vunpack.c.l.b16 %v309
      %v440 = vunpack.c.l.b16 %v310
      %v441 = vunpack.c.l.b16 %v311
      %v442 = vunpack.c.l.b16 %v312
      %v443 = vunpack.c.l.b16 %v313
      %v444 = vunpack.c.l.b16 %v314
      %v445 = vunpack.c.l.b16 %v315
      %v446 = vunpack.c.l.b16 %v316
      %v447 = vunpack.c.l.b16 %v317
      %v448 = vunpack.c.l.b16 %v318
      %v449 = vunpack.c.l.b16 %v319
      %v450 = vunpack.c.l.b16 %v320
      %v451 = vunpack.c.l.b16 %v321
      %v452 = vunpack.c.l.b16 %v322
      %v453 = vunpack.c.l.b16 %v323
      %v454 = vunpack.c.l.b16 %v324
      %v455 = vunpack.c.l.b16 %v325
      %v456 = vunpack.c.l.b16 %v326
      %v457 = vunpack.c.l.b16 %v327
      %v458 = vunpack.c.l.b16 %v328
      %v459 = vunpack.c.l.b16 %v329
      %v460 = vunpack.c.l.b16 %v330
      %v461 = vunpack.c.l.b16 %v331
      %v462 = vunpack.c.l.b16 %v332
      %v463 = vunpack.c.l.b16 %v333
      %v464 = vunpack.c.l.b16 %v334
      %v465 = vunpack.c.l.b16 %v335
      %v466 = vunpack.c.l.b16 %v336
      %v467 = vunpack.c.l.b16 %v337
      %v468 = vunpack.c.l.b16 %v338
      %v469 = vunpack.c.l.b16 %v339
      %v470 = vunpack.c.l.b16 %v340
      %v471 = vunpack.c.l.b16 %v341
      %v472 = vunpack.c.l.b16 %v342
      %v473 = vunpack.c.l.b16 %v343
      %v474 = vunpack.c.l.b16 %v344
      %v475 = vunpack.c.l.b16 %v345
      %v476 = vunpack.c.l.b16 %v346
      %v477 = vunpack.c.l.b16 %v347
      %v478 = vunpack.c.l.b16 %v348
      %v479 = vunpack.c.l.b16 %v349
      %v480 = vpack.c.b16 %v417, %v416
      %v481 = vpack.c.b16 %v419, %v418
      %v482 = vpack.c.b16 %v421, %v420
      %v483 = vpack.c.b16 %v423, %v422
      %v484 = vpack.c.b16 %v425, %v424
      %v485 = vpack.c.b16 %v427, %v426
      %v486 = vpack.c.b16 %v429, %v428
      %v487 = vpack.c.b16 %v431, %v430
      %v488 = vpack.c.b16 %v433, %v432
      %v489 = vpack.c.b16 %v435, %v434
      %v490 = vpack.c.b16 %v437, %v436
      %v491 = vpack.c.b16 %v439, %v438
      %v492 = vpack.c.b16 %v441, %v440
      %v493 = vpack.c.b16 %v443, %v442
      %v494 = vpack.c.b16 %v445, %v444
      %v495 = vpack.c.b16 %v447, %v446
      %v496 = vpack.c.b16 %v449, %v448
      %v497 = vpack.c.b16 %v451, %v450
      %v498 = vpack.c.b16 %v453, %v452
      %v499 = vpack.c.b16 %v455, %v454
      %v500 = vpack.c.b16 %v457, %v456
      %v501 = vpack.c.b16 %v459, %v458
      %v502 = vpack.c.b16 %v461, %v460
      %v503 = vpack.c.b16 %v463, %v462
      %v504 = vpack.c.b16 %v465, %v464
      %v505 = vpack.c.b16 %v467, %v466
      %v506 = vpack.c.b16 %v469, %v468
      %v507 = vpack.c.b16 %v471, %v470
      %v508 = vpack.c.b16 %v473, %v472
      %v509 = vpack.c.b16 %v475, %v474
      %v510 = vpack.c.b16 %v477, %v476
      %v511 = vpack.c.b16 %v479, %v478
      %v514 = vunpack.c.l.b16 %v350
      %v515 = vunpack.c.l.b16 %v351
      %v516 = vpack.c.b16 %v515, %v514
      %vm518 = vcmask 130048
      %v520 = vsel %vm518, %v480, 0
      %v523 = vsel %vm518, %v481, 0
      %v526 = vsel %vm518, %v482, 0
      %v529 = vsel %vm518, %v483, 0
      %v532 = vsel %vm518, %v484, 0
      %v535 = vsel %vm518, %v485, 0
      %v538 = vsel %vm518, %v486, 0
      %v541 = vsel %vm518, %v487, 0
      %v544 = vsel %vm518, %v488, 0
      %v547 = vsel %vm518, %v489, 0
      %v550 = vsel %vm518, %v490, 0
      %v553 = vsel %vm518, %v491, 0
      %v556 = vsel %vm518, %v492, 0
      %v559 = vsel %vm518, %v493, 0
      %v562 = vsel %vm518, %v494, 0
      %v565 = vsel %vm518, %v495, 0
      %v568 = vsel %vm518, %v496, 0
      %v571 = vsel %vm518, %v497, 0
      %v574 = vsel %vm518, %v498, 0
      %v577 = vsel %vm518, %v499, 0
      %v580 = vsel %vm518, %v500, 0
      %v583 = vsel %vm518, %v501, 0
      %v586 = vsel %vm518, %v502, 0
      %v589 = vsel %vm518, %v503, 0
      %v592 = vsel %vm518, %v504, 0
      %v595 = vsel %vm518, %v505, 0
      %v598 = vsel %vm518, %v506, 0
      %v601 = vsel %vm518, %v507, 0
      %v604 = vsel %vm518, %v508, 0
      %v607 = vsel %vm518, %v509, 0
      %v610 = vsel %vm518, %v510, 0
      %v613 = vsel %vm518, %v511, 0
      %615 = vmatprep.subr.bf16.mxu0 0
      %616 = vmatpush1.bf16.msra.mxu0 0
      %617 = vmatprep.subr.bf16.mxu0 0
      %618 = vmatpush1.bf16.msra.mxu0 0
      %619 = vmatprep.subr.bf16.mxu0 0
      %620 = vmatpush1.bf16.msra.mxu0 0
      %621 = vmatprep.subr.bf16.mxu0 0
      %622 = vmatpush1.bf16.msra.mxu0 0
      %623 = vmatprep.subr.bf16.mxu0 0
      %624 = vmatpush1.bf16.msra.mxu0 0
      %625 = vmatprep.subr.bf16.mxu0 0
      %626 = vmatpush1.bf16.msra.mxu0 0
      %627 = vmatprep.subr.bf16.mxu0 0
      %628 = vmatpush1.bf16.msra.mxu0 0
      %629 = vmatprep.subr.bf16.mxu0 0
      %630 = vmatpush1.bf16.msra.mxu0 %v516
      %631 = vmatprep.subr.bf16.mxu0 0
      %632 = vmatpush2.bf16.msra.mxu0 0
      %633 = vmatprep.subr.bf16.mxu0 0
      %634 = vmatpush2.bf16.msra.mxu0 0
      %635 = vmatprep.subr.bf16.mxu0 0
      %636 = vmatpush2.bf16.msra.mxu0 0
      %637 = vmatprep.subr.bf16.mxu0 0
      %638 = vmatpush2.bf16.msra.mxu0 0
      %639 = vmatprep.subr.bf16.mxu0 0
      %640 = vmatpush2.bf16.msra.mxu0 0
      %641 = vmatprep.subr.bf16.mxu0 0
      %642 = vmatpush2.bf16.msra.mxu0 0
      %643 = vmatprep.subr.bf16.mxu0 0
      %644 = vmatpush2.bf16.msra.mxu0 0
      %645 = vmatprep.subr.bf16.mxu0 0
      %646 = vmatpush2.bf16.msra.mxu0 0
      %647 = vmatprep.mubr.bf16.mxu0 0
      %648 = vmatmul.mubr.bf16.gmra.mxu0 %v520
      %v649 = vpop.f32.mrf.mxu0
      %v650 = vadd.f32 0.0, %v649
      %v651 = vpop.f32.mrf.mxu0
      %v652 = vpop.f32.mrf.mxu0
      %v653 = vadd.f32 0.0, %v652
      %v654 = vpop.f32.mrf.mxu0
      %655 = vmatprep.mubr.bf16.mxu0 0
      %656 = vmatmul.mubr.bf16.gmra.mxu0 %v523
      %v657 = vpop.f32.mrf.mxu0
      %v658 = vadd.f32 0.0, %v657
      %v659 = vpop.f32.mrf.mxu0
      %v660 = vpop.f32.mrf.mxu0
      %v661 = vadd.f32 0.0, %v660
      %v662 = vpop.f32.mrf.mxu0
      %663 = vmatprep.mubr.bf16.mxu0 0
      %664 = vmatmul.mubr.bf16.gmra.mxu0 %v526
      %v665 = vpop.f32.mrf.mxu0
      %v666 = vadd.f32 0.0, %v665
      %v667 = vpop.f32.mrf.mxu0
      %v668 = vpop.f32.mrf.mxu0
      %v669 = vadd.f32 0.0, %v668
      %v670 = vpop.f32.mrf.mxu0
      %671 = vmatprep.mubr.bf16.mxu0 0
      %672 = vmatmul.mubr.bf16.gmra.mxu0 %v529
      %v673 = vpop.f32.mrf.mxu0
      %v674 = vadd.f32 0.0, %v673
      %v675 = vpop.f32.mrf.mxu0
      %v676 = vpop.f32.mrf.mxu0
      %v677 = vadd.f32 0.0, %v676
      %v678 = vpop.f32.mrf.mxu0
      %679 = vmatprep.mubr.bf16.mxu0 0
      %680 = vmatmul.mubr.bf16.gmra.mxu0 %v532
      %v681 = vpop.f32.mrf.mxu0
      %v682 = vadd.f32 0.0, %v681
      %v683 = vpop.f32.mrf.mxu0
      %v684 = vpop.f32.mrf.mxu0
      %v685 = vadd.f32 0.0, %v684
      %v686 = vpop.f32.mrf.mxu0
      %687 = vmatprep.mubr.bf16.mxu0 0
      %688 = vmatmul.mubr.bf16.gmra.mxu0 %v535
      %v689 = vpop.f32.mrf.mxu0
      %v690 = vadd.f32 0.0, %v689
      %v691 = vpop.f32.mrf.mxu0
      %v692 = vpop.f32.mrf.mxu0
      %v693 = vadd.f32 0.0, %v692
      %v694 = vpop.f32.mrf.mxu0
      %695 = vmatprep.mubr.bf16.mxu0 0
      %696 = vmatmul.mubr.bf16.gmra.mxu0 %v538
      %v697 = vpop.f32.mrf.mxu0
      %v698 = vadd.f32 0.0, %v697
      %v699 = vpop.f32.mrf.mxu0
      %v700 = vpop.f32.mrf.mxu0
      %v701 = vadd.f32 0.0, %v700
      %v702 = vpop.f32.mrf.mxu0
      %703 = vmatprep.mubr.bf16.mxu0 0
      %704 = vmatmul.mubr.bf16.gmra.mxu0 %v541
      %v705 = vpop.f32.mrf.mxu0
      %v706 = vadd.f32 0.0, %v705
      %v707 = vpop.f32.mrf.mxu0
      %v708 = vpop.f32.mrf.mxu0
      %v709 = vadd.f32 0.0, %v708
      %v710 = vpop.f32.mrf.mxu0
      %711 = vmatprep.mubr.bf16.mxu0 0
      %712 = vmatmul.mubr.bf16.gmra.mxu0 %v544
      %v713 = vpop.f32.mrf.mxu0
      %v714 = vadd.f32 0.0, %v713
      %v715 = vpop.f32.mrf.mxu0
      %v716 = vpop.f32.mrf.mxu0
      %v717 = vadd.f32 0.0, %v716
      %v718 = vpop.f32.mrf.mxu0
      %719 = vmatprep.mubr.bf16.mxu0 0
      %720 = vmatmul.mubr.bf16.gmra.mxu0 %v547
      %v721 = vpop.f32.mrf.mxu0
      %v722 = vadd.f32 0.0, %v721
      %v723 = vpop.f32.mrf.mxu0
      %v724 = vpop.f32.mrf.mxu0
      %v725 = vadd.f32 0.0, %v724
      %v726 = vpop.f32.mrf.mxu0
      %727 = vmatprep.mubr.bf16.mxu0 0
      %728 = vmatmul.mubr.bf16.gmra.mxu0 %v550
      %v729 = vpop.f32.mrf.mxu0
      %v730 = vadd.f32 0.0, %v729
      %v731 = vpop.f32.mrf.mxu0
      %v732 = vpop.f32.mrf.mxu0
      %v733 = vadd.f32 0.0, %v732
      %v734 = vpop.f32.mrf.mxu0
      %735 = vmatprep.mubr.bf16.mxu0 0
      %736 = vmatmul.mubr.bf16.gmra.mxu0 %v553
      %v737 = vpop.f32.mrf.mxu0
      %v738 = vadd.f32 0.0, %v737
      %v739 = vpop.f32.mrf.mxu0
      %v740 = vpop.f32.mrf.mxu0
      %v741 = vadd.f32 0.0, %v740
      %v742 = vpop.f32.mrf.mxu0
      %743 = vmatprep.mubr.bf16.mxu0 0
      %744 = vmatmul.mubr.bf16.gmra.mxu0 %v556
      %v745 = vpop.f32.mrf.mxu0
      %v746 = vadd.f32 0.0, %v745
      %v747 = vpop.f32.mrf.mxu0
      %v748 = vpop.f32.mrf.mxu0
      %v749 = vadd.f32 0.0, %v748
      %v750 = vpop.f32.mrf.mxu0
      %751 = vmatprep.mubr.bf16.mxu0 0
      %752 = vmatmul.mubr.bf16.gmra.mxu0 %v559
      %v753 = vpop.f32.mrf.mxu0
      %v754 = vadd.f32 0.0, %v753
      %v755 = vpop.f32.mrf.mxu0
      %v756 = vpop.f32.mrf.mxu0
      %v757 = vadd.f32 0.0, %v756
      %v758 = vpop.f32.mrf.mxu0
      %759 = vmatprep.mubr.bf16.mxu0 0
      %760 = vmatmul.mubr.bf16.gmra.mxu0 %v562
      %v761 = vpop.f32.mrf.mxu0
      %v762 = vadd.f32 0.0, %v761
      %v763 = vpop.f32.mrf.mxu0
      %v764 = vpop.f32.mrf.mxu0
      %v765 = vadd.f32 0.0, %v764
      %v766 = vpop.f32.mrf.mxu0
      %767 = vmatprep.mubr.bf16.mxu0 0
      %768 = vmatmul.mubr.bf16.gmra.mxu0 %v565
      %v769 = vpop.f32.mrf.mxu0
      %v770 = vadd.f32 0.0, %v769
      %v771 = vpop.f32.mrf.mxu0
      %v772 = vpop.f32.mrf.mxu0
      %v773 = vadd.f32 0.0, %v772
      %v774 = vpop.f32.mrf.mxu0
      %775 = vmatprep.mubr.bf16.mxu0 0
      %776 = vmatmul.mubr.bf16.gmra.mxu0 %v568
      %v777 = vpop.f32.mrf.mxu0
      %v778 = vadd.f32 0.0, %v777
      %v779 = vpop.f32.mrf.mxu0
      %v780 = vpop.f32.mrf.mxu0
      %v781 = vadd.f32 0.0, %v780
      %v782 = vpop.f32.mrf.mxu0
      %783 = vmatprep.mubr.bf16.mxu0 0
      %784 = vmatmul.mubr.bf16.gmra.mxu0 %v571
      %v785 = vpop.f32.mrf.mxu0
      %v786 = vadd.f32 0.0, %v785
      %v787 = vpop.f32.mrf.mxu0
      %v788 = vpop.f32.mrf.mxu0
      %v789 = vadd.f32 0.0, %v788
      %v790 = vpop.f32.mrf.mxu0
      %791 = vmatprep.mubr.bf16.mxu0 0
      %792 = vmatmul.mubr.bf16.gmra.mxu0 %v574
      %v793 = vpop.f32.mrf.mxu0
      %v794 = vadd.f32 0.0, %v793
      %v795 = vpop.f32.mrf.mxu0
      %v796 = vpop.f32.mrf.mxu0
      %v797 = vadd.f32 0.0, %v796
      %v798 = vpop.f32.mrf.mxu0
      %799 = vmatprep.mubr.bf16.mxu0 0
      %800 = vmatmul.mubr.bf16.gmra.mxu0 %v577
      %v801 = vpop.f32.mrf.mxu0
      %v802 = vadd.f32 0.0, %v801
      %v803 = vpop.f32.mrf.mxu0
      %v804 = vpop.f32.mrf.mxu0
      %v805 = vadd.f32 0.0, %v804
      %v806 = vpop.f32.mrf.mxu0
      %807 = vmatprep.mubr.bf16.mxu0 0
      %808 = vmatmul.mubr.bf16.gmra.mxu0 %v580
      %v809 = vpop.f32.mrf.mxu0
      %v810 = vadd.f32 0.0, %v809
      %v811 = vpop.f32.mrf.mxu0
      %v812 = vpop.f32.mrf.mxu0
      %v813 = vadd.f32 0.0, %v812
      %v814 = vpop.f32.mrf.mxu0
      %815 = vmatprep.mubr.bf16.mxu0 0
      %816 = vmatmul.mubr.bf16.gmra.mxu0 %v583
      %v817 = vpop.f32.mrf.mxu0
      %v818 = vadd.f32 0.0, %v817
      %v819 = vpop.f32.mrf.mxu0
      %v820 = vpop.f32.mrf.mxu0
      %v821 = vadd.f32 0.0, %v820
      %v822 = vpop.f32.mrf.mxu0
      %823 = vmatprep.mubr.bf16.mxu0 0
      %824 = vmatmul.mubr.bf16.gmra.mxu0 %v586
      %v825 = vpop.f32.mrf.mxu0
      %v826 = vadd.f32 0.0, %v825
      %v827 = vpop.f32.mrf.mxu0
      %v828 = vpop.f32.mrf.mxu0
      %v829 = vadd.f32 0.0, %v828
      %v830 = vpop.f32.mrf.mxu0
      %831 = vmatprep.mubr.bf16.mxu0 0
      %832 = vmatmul.mubr.bf16.gmra.mxu0 %v589
      %v833 = vpop.f32.mrf.mxu0
      %v834 = vadd.f32 0.0, %v833
      %v835 = vpop.f32.mrf.mxu0
      %v836 = vpop.f32.mrf.mxu0
      %v837 = vadd.f32 0.0, %v836
      %v838 = vpop.f32.mrf.mxu0
      %839 = vmatprep.mubr.bf16.mxu0 0
      %840 = vmatmul.mubr.bf16.gmra.mxu0 %v592
      %v841 = vpop.f32.mrf.mxu0
      %v842 = vadd.f32 0.0, %v841
      %v843 = vpop.f32.mrf.mxu0
      %v844 = vpop.f32.mrf.mxu0
      %v845 = vadd.f32 0.0, %v844
      %v846 = vpop.f32.mrf.mxu0
      %847 = vmatprep.mubr.bf16.mxu0 0
      %848 = vmatmul.mubr.bf16.gmra.mxu0 %v595
      %v849 = vpop.f32.mrf.mxu0
      %v850 = vadd.f32 0.0, %v849
      %v851 = vpop.f32.mrf.mxu0
      %v852 = vpop.f32.mrf.mxu0
      %v853 = vadd.f32 0.0, %v852
      %v854 = vpop.f32.mrf.mxu0
      %855 = vmatprep.mubr.bf16.mxu0 0
      %856 = vmatmul.mubr.bf16.gmra.mxu0 %v598
      %v857 = vpop.f32.mrf.mxu0
      %v858 = vadd.f32 0.0, %v857
      %v859 = vpop.f32.mrf.mxu0
      %v860 = vpop.f32.mrf.mxu0
      %v861 = vadd.f32 0.0, %v860
      %v862 = vpop.f32.mrf.mxu0
      %863 = vmatprep.mubr.bf16.mxu0 0
      %864 = vmatmul.mubr.bf16.gmra.mxu0 %v601
      %v865 = vpop.f32.mrf.mxu0
      %v866 = vadd.f32 0.0, %v865
      %v867 = vpop.f32.mrf.mxu0
      %v868 = vpop.f32.mrf.mxu0
      %v869 = vadd.f32 0.0, %v868
      %v870 = vpop.f32.mrf.mxu0
      %871 = vmatprep.mubr.bf16.mxu0 0
      %872 = vmatmul.mubr.bf16.gmra.mxu0 %v604
      %v873 = vpop.f32.mrf.mxu0
      %v874 = vadd.f32 0.0, %v873
      %v875 = vpop.f32.mrf.mxu0
      %v876 = vpop.f32.mrf.mxu0
      %v877 = vadd.f32 0.0, %v876
      %v878 = vpop.f32.mrf.mxu0
      %879 = vmatprep.mubr.bf16.mxu0 0
      %880 = vmatmul.mubr.bf16.gmra.mxu0 %v607
      %v881 = vpop.f32.mrf.mxu0
      %v882 = vadd.f32 0.0, %v881
      %v883 = vpop.f32.mrf.mxu0
      %v884 = vpop.f32.mrf.mxu0
      %v885 = vadd.f32 0.0, %v884
      %v886 = vpop.f32.mrf.mxu0
      %887 = vmatprep.mubr.bf16.mxu0 0
      %888 = vmatmul.mubr.bf16.gmra.mxu0 %v610
      %v889 = vpop.f32.mrf.mxu0
      %v890 = vadd.f32 0.0, %v889
      %v891 = vpop.f32.mrf.mxu0
      %v892 = vpop.f32.mrf.mxu0
      %v893 = vadd.f32 0.0, %v892
      %v894 = vpop.f32.mrf.mxu0
      %895 = vmatprep.mubr.bf16.mxu0 0
      %896 = vmatmul.mubr.bf16.gmra.mxu0 %v613
      %v897 = vpop.f32.mrf.mxu0
      %v898 = vadd.f32 0.0, %v897
      %v899 = vpop.f32.mrf.mxu0
      %v900 = vpop.f32.mrf.mxu0
      %v901 = vadd.f32 0.0, %v900
      %v902 = vpop.f32.mrf.mxu0
      %903 = vdwg.mxu0
      %v904 = vpack.c.bf16 %v653, %v650
      %v905 = vpack.c.bf16 %v661, %v658
      %v906 = vpack.c.bf16 %v669, %v666
      %v907 = vpack.c.bf16 %v677, %v674
      %v908 = vpack.c.bf16 %v685, %v682
      %v909 = vpack.c.bf16 %v693, %v690
      %v910 = vpack.c.bf16 %v701, %v698
      %v911 = vpack.c.bf16 %v709, %v706
      %v912 = vpack.c.bf16 %v717, %v714
      %v913 = vpack.c.bf16 %v725, %v722
      %v914 = vpack.c.bf16 %v733, %v730
      %v915 = vpack.c.bf16 %v741, %v738
      %v916 = vpack.c.bf16 %v749, %v746
      %v917 = vpack.c.bf16 %v757, %v754
      %v918 = vpack.c.bf16 %v765, %v762
      %v919 = vpack.c.bf16 %v773, %v770
      %v920 = vpack.c.bf16 %v781, %v778
      %v921 = vpack.c.bf16 %v789, %v786
      %v922 = vpack.c.bf16 %v797, %v794
      %v923 = vpack.c.bf16 %v805, %v802
      %v924 = vpack.c.bf16 %v813, %v810
      %v925 = vpack.c.bf16 %v821, %v818
      %v926 = vpack.c.bf16 %v829, %v826
      %v927 = vpack.c.bf16 %v837, %v834
      %v928 = vpack.c.bf16 %v845, %v842
      %v929 = vpack.c.bf16 %v853, %v850
      %v930 = vpack.c.bf16 %v861, %v858
      %v931 = vpack.c.bf16 %v869, %v866
      %v932 = vpack.c.bf16 %v877, %v874
      %v933 = vpack.c.bf16 %v885, %v882
      %v934 = vpack.c.bf16 %v893, %v890
      %v935 = vpack.c.bf16 %v901, %v898
      %v936 = vld [vmem:[%s2] sm:$0x1]
      %v938 = vpack.i.b16 %v936, %v936
      %v940 = vlaneseq
      %v941 = vshrl.u32 %v940, 7
      %v942 = vsub.s32 0, %v941
      %v943 = vrot.slane %v938, %v942
      %v944 = vadd.bf16 %v904, %v943
      %v945 = vadd.bf16 %v905, %v943
      %v946 = vadd.bf16 %v906, %v943
      %v947 = vadd.bf16 %v907, %v943
      %v948 = vadd.bf16 %v908, %v943
      %v949 = vadd.bf16 %v909, %v943
      %v950 = vadd.bf16 %v910, %v943
      %v951 = vadd.bf16 %v911, %v943
      %v952 = vadd.bf16 %v912, %v943
      %v953 = vadd.bf16 %v913, %v943
      %v954 = vadd.bf16 %v914, %v943
      %v955 = vadd.bf16 %v915, %v943
      %v956 = vadd.bf16 %v916, %v943
      %v957 = vadd.bf16 %v917, %v943
      %v958 = vadd.bf16 %v918, %v943
      %v959 = vadd.bf16 %v919, %v943
      %v960 = vadd.bf16 %v920, %v943
      %v961 = vadd.bf16 %v921, %v943
      %v962 = vadd.bf16 %v922, %v943
      %v963 = vadd.bf16 %v923, %v943
      %v964 = vadd.bf16 %v924, %v943
      %v965 = vadd.bf16 %v925, %v943
      %v966 = vadd.bf16 %v926, %v943
      %v967 = vadd.bf16 %v927, %v943
      %v968 = vadd.bf16 %v928, %v943
      %v969 = vadd.bf16 %v929, %v943
      %v970 = vadd.bf16 %v930, %v943
      %v971 = vadd.bf16 %v931, %v943
      %v972 = vadd.bf16 %v932, %v943
      %v973 = vadd.bf16 %v933, %v943
      %v974 = vadd.bf16 %v934, %v943
      %v975 = vadd.bf16 %v935, %v943
      %v976 = vmul.bf16 %v944, 1045249613
      %v977 = vmul.bf16 %v945, 1045249613
      %v978 = vmul.bf16 %v946, 1045249613
      %v979 = vmul.bf16 %v947, 1045249613
      %v980 = vmul.bf16 %v948, 1045249613
      %v981 = vmul.bf16 %v949, 1045249613
      %v982 = vmul.bf16 %v950, 1045249613
      %v983 = vmul.bf16 %v951, 1045249613
      %v984 = vmul.bf16 %v952, 1045249613
      %v985 = vmul.bf16 %v953, 1045249613
      %v986 = vmul.bf16 %v954, 1045249613
      %v987 = vmul.bf16 %v955, 1045249613
      %v988 = vmul.bf16 %v956, 1045249613
      %v989 = vmul.bf16 %v957, 1045249613
      %v990 = vmul.bf16 %v958, 1045249613
      %v991 = vmul.bf16 %v959, 1045249613
      %v992 = vmul.bf16 %v960, 1045249613
      %v993 = vmul.bf16 %v961, 1045249613
      %v994 = vmul.bf16 %v962, 1045249613
      %v995 = vmul.bf16 %v963, 1045249613
      %v996 = vmul.bf16 %v964, 1045249613
      %v997 = vmul.bf16 %v965, 1045249613
      %v998 = vmul.bf16 %v966, 1045249613
      %v999 = vmul.bf16 %v967, 1045249613
      %v1000 = vmul.bf16 %v968, 1045249613
      %v1001 = vmul.bf16 %v969, 1045249613
      %v1002 = vmul.bf16 %v970, 1045249613
      %v1003 = vmul.bf16 %v971, 1045249613
      %v1004 = vmul.bf16 %v972, 1045249613
      %v1005 = vmul.bf16 %v973, 1045249613
      %v1006 = vmul.bf16 %v974, 1045249613
      %v1007 = vmul.bf16 %v975, 1045249613
      %v1008 = vmax.bf16 %v944, %v976
      %v1009 = vmax.bf16 %v945, %v977
      %v1010 = vmax.bf16 %v946, %v978
      %v1011 = vmax.bf16 %v947, %v979
      %v1012 = vmax.bf16 %v948, %v980
      %v1013 = vmax.bf16 %v949, %v981
      %v1014 = vmax.bf16 %v950, %v982
      %v1015 = vmax.bf16 %v951, %v983
      %v1016 = vmax.bf16 %v952, %v984
      %v1017 = vmax.bf16 %v953, %v985
      %v1018 = vmax.bf16 %v954, %v986
      %v1019 = vmax.bf16 %v955, %v987
      %v1020 = vmax.bf16 %v956, %v988
      %v1021 = vmax.bf16 %v957, %v989
      %v1022 = vmax.bf16 %v958, %v990
      %v1023 = vmax.bf16 %v959, %v991
      %v1024 = vmax.bf16 %v960, %v992
      %v1025 = vmax.bf16 %v961, %v993
      %v1026 = vmax.bf16 %v962, %v994
      %v1027 = vmax.bf16 %v963, %v995
      %v1028 = vmax.bf16 %v964, %v996
      %v1029 = vmax.bf16 %v965, %v997
      %v1030 = vmax.bf16 %v966, %v998
      %v1031 = vmax.bf16 %v967, %v999
      %v1032 = vmax.bf16 %v968, %v1000
      %v1033 = vmax.bf16 %v969, %v1001
      %v1034 = vmax.bf16 %v970, %v1002
      %v1035 = vmax.bf16 %v971, %v1003
      %v1036 = vmax.bf16 %v972, %v1004
      %v1037 = vmax.bf16 %v973, %v1005
      %v1038 = vmax.bf16 %v974, %v1006
      %v1039 = vmax.bf16 %v975, %v1007
      %v1040 = vld [vmem:[%s3] sm:$0xf]
      %v1041 = vld [vmem:[%s3 + $0x4] sm:$0xf]
      %v1042 = vld [vmem:[%s3 + $0x8] sm:$0xf]
      %v1043 = vld [vmem:[%s3 + $0xc] sm:$0xf]
      %v1044 = vld [vmem:[%s3 + $0x10] sm:$0xf]
      %v1045 = vld [vmem:[%s3 + $0x14] sm:$0xf]
      %v1046 = vld [vmem:[%s3 + $0x18] sm:$0xf]
      %v1047 = vld [vmem:[%s3 + $0x1c] sm:$0xf]
      %v1048 = vld [vmem:[%s3 + $0x20] sm:$0xf]
      %v1049 = vld [vmem:[%s3 + $0x24] sm:$0xf]
      %v1050 = vld [vmem:[%s3 + $0x28] sm:$0xf]
      %v1051 = vld [vmem:[%s3 + $0x2c] sm:$0xf]
      %v1052 = vld [vmem:[%s3 + $0x30] sm:$0xf]
      %v1053 = vld [vmem:[%s3 + $0x34] sm:$0xf]
      %v1054 = vld [vmem:[%s3 + $0x38] sm:$0xf]
      %v1055 = vld [vmem:[%s3 + $0x3c] sm:$0xf]
      %v1072 = vunpack.c.l.b16 %v1040
      %v1073 = vunpack.c.l.b16 %v1041
      %v1074 = vunpack.c.l.b16 %v1042
      %v1075 = vunpack.c.l.b16 %v1043
      %v1076 = vunpack.c.l.b16 %v1044
      %v1077 = vunpack.c.l.b16 %v1045
      %v1078 = vunpack.c.l.b16 %v1046
      %v1079 = vunpack.c.l.b16 %v1047
      %v1080 = vunpack.c.l.b16 %v1048
      %v1081 = vunpack.c.l.b16 %v1049
      %v1082 = vunpack.c.l.b16 %v1050
      %v1083 = vunpack.c.l.b16 %v1051
      %v1084 = vunpack.c.l.b16 %v1052
      %v1085 = vunpack.c.l.b16 %v1053
      %v1086 = vunpack.c.l.b16 %v1054
      %v1087 = vunpack.c.l.b16 %v1055
      %v1088 = vpack.c.b16 %v1073, %v1072
      %v1089 = vpack.c.b16 %v1075, %v1074
      %v1090 = vpack.c.b16 %v1077, %v1076
      %v1091 = vpack.c.b16 %v1079, %v1078
      %v1092 = vpack.c.b16 %v1081, %v1080
      %v1093 = vpack.c.b16 %v1083, %v1082
      %v1094 = vpack.c.b16 %v1085, %v1084
      %v1095 = vpack.c.b16 %v1087, %v1086
      %1104 = vmatprep.subr.bf16.mxu0 0
      %1105 = vmatpush1.bf16.msra.mxu0 %v1095
      %1106 = vmatprep.subr.bf16.mxu0 0
      %1107 = vmatpush1.bf16.msra.mxu0 %v1094
      %1108 = vmatprep.subr.bf16.mxu0 0
      %1109 = vmatpush1.bf16.msra.mxu0 %v1093
      %1110 = vmatprep.subr.bf16.mxu0 0
      %1111 = vmatpush1.bf16.msra.mxu0 %v1092
      %1112 = vmatprep.subr.bf16.mxu0 0
      %1113 = vmatpush1.bf16.msra.mxu0 %v1091
      %1114 = vmatprep.subr.bf16.mxu0 0
      %1115 = vmatpush1.bf16.msra.mxu0 %v1090
      %1116 = vmatprep.subr.bf16.mxu0 0
      %1117 = vmatpush1.bf16.msra.mxu0 %v1089
      %1118 = vmatprep.subr.bf16.mxu0 0
      %1119 = vmatpush1.bf16.msra.mxu0 %v1088
      %1120 = vmatprep.subr.bf16.mxu0 0
      %1121 = vmatpush2.bf16.msra.mxu0 0
      %1122 = vmatprep.subr.bf16.mxu0 0
      %1123 = vmatpush2.bf16.msra.mxu0 0
      %1124 = vmatprep.subr.bf16.mxu0 0
      %1125 = vmatpush2.bf16.msra.mxu0 0
      %1126 = vmatprep.subr.bf16.mxu0 0
      %1127 = vmatpush2.bf16.msra.mxu0 0
      %1128 = vmatprep.subr.bf16.mxu0 0
      %1129 = vmatpush2.bf16.msra.mxu0 0
      %1130 = vmatprep.subr.bf16.mxu0 0
      %1131 = vmatpush2.bf16.msra.mxu0 0
      %1132 = vmatprep.subr.bf16.mxu0 0
      %1133 = vmatpush2.bf16.msra.mxu0 0
      %1134 = vmatprep.subr.bf16.mxu0 0
      %1135 = vmatpush2.bf16.msra.mxu0 0
      %1136 = vmatprep.mubr.bf16.mxu0 0
      %1137 = vmatmul.mubr.bf16.gmra.mxu0 %v1008
      %v1138 = vpop.f32.mrf.mxu0
      %v1139 = vadd.f32 0.0, %v1138
      %v1140 = vpop.f32.mrf.mxu0
      %v1141 = vpop.f32.mrf.mxu0
      %v1142 = vadd.f32 0.0, %v1141
      %v1143 = vpop.f32.mrf.mxu0
      %1144 = vmatprep.mubr.bf16.mxu0 0
      %1145 = vmatmul.mubr.bf16.gmra.mxu0 %v1009
      %v1146 = vpop.f32.mrf.mxu0
      %v1147 = vadd.f32 0.0, %v1146
      %v1148 = vpop.f32.mrf.mxu0
      %v1149 = vpop.f32.mrf.mxu0
      %v1150 = vadd.f32 0.0, %v1149
      %v1151 = vpop.f32.mrf.mxu0
      %1152 = vmatprep.mubr.bf16.mxu0 0
      %1153 = vmatmul.mubr.bf16.gmra.mxu0 %v1010
      %v1154 = vpop.f32.mrf.mxu0
      %v1155 = vadd.f32 0.0, %v1154
      %v1156 = vpop.f32.mrf.mxu0
      %v1157 = vpop.f32.mrf.mxu0
      %v1158 = vadd.f32 0.0, %v1157
      %v1159 = vpop.f32.mrf.mxu0
      %1160 = vmatprep.mubr.bf16.mxu0 0
      %1161 = vmatmul.mubr.bf16.gmra.mxu0 %v1011
      %v1162 = vpop.f32.mrf.mxu0
      %v1163 = vadd.f32 0.0, %v1162
      %v1164 = vpop.f32.mrf.mxu0
      %v1165 = vpop.f32.mrf.mxu0
      %v1166 = vadd.f32 0.0, %v1165
      %v1167 = vpop.f32.mrf.mxu0
      %1168 = vmatprep.mubr.bf16.mxu0 0
      %1169 = vmatmul.mubr.bf16.gmra.mxu0 %v1012
      %v1170 = vpop.f32.mrf.mxu0
      %v1171 = vadd.f32 0.0, %v1170
      %v1172 = vpop.f32.mrf.mxu0
      %v1173 = vpop.f32.mrf.mxu0
      %v1174 = vadd.f32 0.0, %v1173
      %v1175 = vpop.f32.mrf.mxu0
      %1176 = vmatprep.mubr.bf16.mxu0 0
      %1177 = vmatmul.mubr.bf16.gmra.mxu0 %v1013
      %v1178 = vpop.f32.mrf.mxu0
      %v1179 = vadd.f32 0.0, %v1178
      %v1180 = vpop.f32.mrf.mxu0
      %v1181 = vpop.f32.mrf.mxu0
      %v1182 = vadd.f32 0.0, %v1181
      %v1183 = vpop.f32.mrf.mxu0
      %1184 = vmatprep.mubr.bf16.mxu0 0
      %1185 = vmatmul.mubr.bf16.gmra.mxu0 %v1014
      %v1186 = vpop.f32.mrf.mxu0
      %v1187 = vadd.f32 0.0, %v1186
      %v1188 = vpop.f32.mrf.mxu0
      %v1189 = vpop.f32.mrf.mxu0
      %v1190 = vadd.f32 0.0, %v1189
      %v1191 = vpop.f32.mrf.mxu0
      %1192 = vmatprep.mubr.bf16.mxu0 0
      %1193 = vmatmul.mubr.bf16.gmra.mxu0 %v1015
      %v1194 = vpop.f32.mrf.mxu0
      %v1195 = vadd.f32 0.0, %v1194
      %v1196 = vpop.f32.mrf.mxu0
      %v1197 = vpop.f32.mrf.mxu0
      %v1198 = vadd.f32 0.0, %v1197
      %v1199 = vpop.f32.mrf.mxu0
      %1200 = vmatprep.mubr.bf16.mxu0 0
      %1201 = vmatmul.mubr.bf16.gmra.mxu0 %v1016
      %v1202 = vpop.f32.mrf.mxu0
      %v1203 = vadd.f32 0.0, %v1202
      %v1204 = vpop.f32.mrf.mxu0
      %v1205 = vpop.f32.mrf.mxu0
      %v1206 = vadd.f32 0.0, %v1205
      %v1207 = vpop.f32.mrf.mxu0
      %1208 = vmatprep.mubr.bf16.mxu0 0
      %1209 = vmatmul.mubr.bf16.gmra.mxu0 %v1017
      %v1210 = vpop.f32.mrf.mxu0
      %v1211 = vadd.f32 0.0, %v1210
      %v1212 = vpop.f32.mrf.mxu0
      %v1213 = vpop.f32.mrf.mxu0
      %v1214 = vadd.f32 0.0, %v1213
      %v1215 = vpop.f32.mrf.mxu0
      %1216 = vmatprep.mubr.bf16.mxu0 0
      %1217 = vmatmul.mubr.bf16.gmra.mxu0 %v1018
      %v1218 = vpop.f32.mrf.mxu0
      %v1219 = vadd.f32 0.0, %v1218
      %v1220 = vpop.f32.mrf.mxu0
      %v1221 = vpop.f32.mrf.mxu0
      %v1222 = vadd.f32 0.0, %v1221
      %v1223 = vpop.f32.mrf.mxu0
      %1224 = vmatprep.mubr.bf16.mxu0 0
      %1225 = vmatmul.mubr.bf16.gmra.mxu0 %v1019
      %v1226 = vpop.f32.mrf.mxu0
      %v1227 = vadd.f32 0.0, %v1226
      %v1228 = vpop.f32.mrf.mxu0
      %v1229 = vpop.f32.mrf.mxu0
      %v1230 = vadd.f32 0.0, %v1229
      %v1231 = vpop.f32.mrf.mxu0
      %1232 = vmatprep.mubr.bf16.mxu0 0
      %1233 = vmatmul.mubr.bf16.gmra.mxu0 %v1020
      %v1234 = vpop.f32.mrf.mxu0
      %v1235 = vadd.f32 0.0, %v1234
      %v1236 = vpop.f32.mrf.mxu0
      %v1237 = vpop.f32.mrf.mxu0
      %v1238 = vadd.f32 0.0, %v1237
      %v1239 = vpop.f32.mrf.mxu0
      %1240 = vmatprep.mubr.bf16.mxu0 0
      %1241 = vmatmul.mubr.bf16.gmra.mxu0 %v1021
      %v1242 = vpop.f32.mrf.mxu0
      %v1243 = vadd.f32 0.0, %v1242
      %v1244 = vpop.f32.mrf.mxu0
      %v1245 = vpop.f32.mrf.mxu0
      %v1246 = vadd.f32 0.0, %v1245
      %v1247 = vpop.f32.mrf.mxu0
      %1248 = vmatprep.mubr.bf16.mxu0 0
      %1249 = vmatmul.mubr.bf16.gmra.mxu0 %v1022
      %v1250 = vpop.f32.mrf.mxu0
      %v1251 = vadd.f32 0.0, %v1250
      %v1252 = vpop.f32.mrf.mxu0
      %v1253 = vpop.f32.mrf.mxu0
      %v1254 = vadd.f32 0.0, %v1253
      %v1255 = vpop.f32.mrf.mxu0
      %1256 = vmatprep.mubr.bf16.mxu0 0
      %1257 = vmatmul.mubr.bf16.gmra.mxu0 %v1023
      %v1258 = vpop.f32.mrf.mxu0
      %v1259 = vadd.f32 0.0, %v1258
      %v1260 = vpop.f32.mrf.mxu0
      %v1261 = vpop.f32.mrf.mxu0
      %v1262 = vadd.f32 0.0, %v1261
      %v1263 = vpop.f32.mrf.mxu0
      %1264 = vmatprep.mubr.bf16.mxu0 0
      %1265 = vmatmul.mubr.bf16.gmra.mxu0 %v1024
      %v1266 = vpop.f32.mrf.mxu0
      %v1267 = vadd.f32 0.0, %v1266
      %v1268 = vpop.f32.mrf.mxu0
      %v1269 = vpop.f32.mrf.mxu0
      %v1270 = vadd.f32 0.0, %v1269
      %v1271 = vpop.f32.mrf.mxu0
      %1272 = vmatprep.mubr.bf16.mxu0 0
      %1273 = vmatmul.mubr.bf16.gmra.mxu0 %v1025
      %v1274 = vpop.f32.mrf.mxu0
      %v1275 = vadd.f32 0.0, %v1274
      %v1276 = vpop.f32.mrf.mxu0
      %v1277 = vpop.f32.mrf.mxu0
      %v1278 = vadd.f32 0.0, %v1277
      %v1279 = vpop.f32.mrf.mxu0
      %1280 = vmatprep.mubr.bf16.mxu0 0
      %1281 = vmatmul.mubr.bf16.gmra.mxu0 %v1026
      %v1282 = vpop.f32.mrf.mxu0
      %v1283 = vadd.f32 0.0, %v1282
      %v1284 = vpop.f32.mrf.mxu0
      %v1285 = vpop.f32.mrf.mxu0
      %v1286 = vadd.f32 0.0, %v1285
      %v1287 = vpop.f32.mrf.mxu0
      %1288 = vmatprep.mubr.bf16.mxu0 0
      %1289 = vmatmul.mubr.bf16.gmra.mxu0 %v1027
      %v1290 = vpop.f32.mrf.mxu0
      %v1291 = vadd.f32 0.0, %v1290
      %v1292 = vpop.f32.mrf.mxu0
      %v1293 = vpop.f32.mrf.mxu0
      %v1294 = vadd.f32 0.0, %v1293
      %v1295 = vpop.f32.mrf.mxu0
      %1296 = vmatprep.mubr.bf16.mxu0 0
      %1297 = vmatmul.mubr.bf16.gmra.mxu0 %v1028
      %v1298 = vpop.f32.mrf.mxu0
      %v1299 = vadd.f32 0.0, %v1298
      %v1300 = vpop.f32.mrf.mxu0
      %v1301 = vpop.f32.mrf.mxu0
      %v1302 = vadd.f32 0.0, %v1301
      %v1303 = vpop.f32.mrf.mxu0
      %1304 = vmatprep.mubr.bf16.mxu0 0
      %1305 = vmatmul.mubr.bf16.gmra.mxu0 %v1029
      %v1306 = vpop.f32.mrf.mxu0
      %v1307 = vadd.f32 0.0, %v1306
      %v1308 = vpop.f32.mrf.mxu0
      %v1309 = vpop.f32.mrf.mxu0
      %v1310 = vadd.f32 0.0, %v1309
      %v1311 = vpop.f32.mrf.mxu0
      %1312 = vmatprep.mubr.bf16.mxu0 0
      %1313 = vmatmul.mubr.bf16.gmra.mxu0 %v1030
      %v1314 = vpop.f32.mrf.mxu0
      %v1315 = vadd.f32 0.0, %v1314
      %v1316 = vpop.f32.mrf.mxu0
      %v1317 = vpop.f32.mrf.mxu0
      %v1318 = vadd.f32 0.0, %v1317
      %v1319 = vpop.f32.mrf.mxu0
      %1320 = vmatprep.mubr.bf16.mxu0 0
      %1321 = vmatmul.mubr.bf16.gmra.mxu0 %v1031
      %v1322 = vpop.f32.mrf.mxu0
      %v1323 = vadd.f32 0.0, %v1322
      %v1324 = vpop.f32.mrf.mxu0
      %v1325 = vpop.f32.mrf.mxu0
      %v1326 = vadd.f32 0.0, %v1325
      %v1327 = vpop.f32.mrf.mxu0
      %1328 = vmatprep.mubr.bf16.mxu0 0
      %1329 = vmatmul.mubr.bf16.gmra.mxu0 %v1032
      %v1330 = vpop.f32.mrf.mxu0
      %v1331 = vadd.f32 0.0, %v1330
      %v1332 = vpop.f32.mrf.mxu0
      %v1333 = vpop.f32.mrf.mxu0
      %v1334 = vadd.f32 0.0, %v1333
      %v1335 = vpop.f32.mrf.mxu0
      %1336 = vmatprep.mubr.bf16.mxu0 0
      %1337 = vmatmul.mubr.bf16.gmra.mxu0 %v1033
      %v1338 = vpop.f32.mrf.mxu0
      %v1339 = vadd.f32 0.0, %v1338
      %v1340 = vpop.f32.mrf.mxu0
      %v1341 = vpop.f32.mrf.mxu0
      %v1342 = vadd.f32 0.0, %v1341
      %v1343 = vpop.f32.mrf.mxu0
      %1344 = vmatprep.mubr.bf16.mxu0 0
      %1345 = vmatmul.mubr.bf16.gmra.mxu0 %v1034
      %v1346 = vpop.f32.mrf.mxu0
      %v1347 = vadd.f32 0.0, %v1346
      %v1348 = vpop.f32.mrf.mxu0
      %v1349 = vpop.f32.mrf.mxu0
      %v1350 = vadd.f32 0.0, %v1349
      %v1351 = vpop.f32.mrf.mxu0
      %1352 = vmatprep.mubr.bf16.mxu0 0
      %1353 = vmatmul.mubr.bf16.gmra.mxu0 %v1035
      %v1354 = vpop.f32.mrf.mxu0
      %v1355 = vadd.f32 0.0, %v1354
      %v1356 = vpop.f32.mrf.mxu0
      %v1357 = vpop.f32.mrf.mxu0
      %v1358 = vadd.f32 0.0, %v1357
      %v1359 = vpop.f32.mrf.mxu0
      %1360 = vmatprep.mubr.bf16.mxu0 0
      %1361 = vmatmul.mubr.bf16.gmra.mxu0 %v1036
      %v1362 = vpop.f32.mrf.mxu0
      %v1363 = vadd.f32 0.0, %v1362
      %v1364 = vpop.f32.mrf.mxu0
      %v1365 = vpop.f32.mrf.mxu0
      %v1366 = vadd.f32 0.0, %v1365
      %v1367 = vpop.f32.mrf.mxu0
      %1368 = vmatprep.mubr.bf16.mxu0 0
      %1369 = vmatmul.mubr.bf16.gmra.mxu0 %v1037
      %v1370 = vpop.f32.mrf.mxu0
      %v1371 = vadd.f32 0.0, %v1370
      %v1372 = vpop.f32.mrf.mxu0
      %v1373 = vpop.f32.mrf.mxu0
      %v1374 = vadd.f32 0.0, %v1373
      %v1375 = vpop.f32.mrf.mxu0
      %1376 = vmatprep.mubr.bf16.mxu0 0
      %1377 = vmatmul.mubr.bf16.gmra.mxu0 %v1038
      %v1378 = vpop.f32.mrf.mxu0
      %v1379 = vadd.f32 0.0, %v1378
      %v1380 = vpop.f32.mrf.mxu0
      %v1381 = vpop.f32.mrf.mxu0
      %v1382 = vadd.f32 0.0, %v1381
      %v1383 = vpop.f32.mrf.mxu0
      %1384 = vmatprep.mubr.bf16.mxu0 0
      %1385 = vmatmul.mubr.bf16.gmra.mxu0 %v1039
      %v1386 = vpop.f32.mrf.mxu0
      %v1387 = vadd.f32 0.0, %v1386
      %v1388 = vpop.f32.mrf.mxu0
      %v1389 = vpop.f32.mrf.mxu0
      %v1390 = vadd.f32 0.0, %v1389
      %v1391 = vpop.f32.mrf.mxu0
      %1392 = vdwg.mxu0
      %v1393 = vpack.c.bf16 %v1142, %v1139
      %v1394 = vpack.c.bf16 %v1150, %v1147
      %v1395 = vpack.c.bf16 %v1158, %v1155
      %v1396 = vpack.c.bf16 %v1166, %v1163
      %v1397 = vpack.c.bf16 %v1174, %v1171
      %v1398 = vpack.c.bf16 %v1182, %v1179
      %v1399 = vpack.c.bf16 %v1190, %v1187
      %v1400 = vpack.c.bf16 %v1198, %v1195
      %v1401 = vpack.c.bf16 %v1206, %v1203
      %v1402 = vpack.c.bf16 %v1214, %v1211
      %v1403 = vpack.c.bf16 %v1222, %v1219
      %v1404 = vpack.c.bf16 %v1230, %v1227
      %v1405 = vpack.c.bf16 %v1238, %v1235
      %v1406 = vpack.c.bf16 %v1246, %v1243
      %v1407 = vpack.c.bf16 %v1254, %v1251
      %v1408 = vpack.c.bf16 %v1262, %v1259
      %v1409 = vpack.c.bf16 %v1270, %v1267
      %v1410 = vpack.c.bf16 %v1278, %v1275
      %v1411 = vpack.c.bf16 %v1286, %v1283
      %v1412 = vpack.c.bf16 %v1294, %v1291
      %v1413 = vpack.c.bf16 %v1302, %v1299
      %v1414 = vpack.c.bf16 %v1310, %v1307
      %v1415 = vpack.c.bf16 %v1318, %v1315
      %v1416 = vpack.c.bf16 %v1326, %v1323
      %v1417 = vpack.c.bf16 %v1334, %v1331
      %v1418 = vpack.c.bf16 %v1342, %v1339
      %v1419 = vpack.c.bf16 %v1350, %v1347
      %v1420 = vpack.c.bf16 %v1358, %v1355
      %v1421 = vpack.c.bf16 %v1366, %v1363
      %v1422 = vpack.c.bf16 %v1374, %v1371
      %v1423 = vpack.c.bf16 %v1382, %v1379
      %v1424 = vpack.c.bf16 %v1390, %v1387
      %v1425 = vld [vmem:[%s4] sm:$0x1]
      %v1427 = vpack.i.b16 %v1425, %v1425
      %v1429 = vlaneseq
      %v1430 = vshrl.u32 %v1429, 7
      %v1431 = vsub.s32 0, %v1430
      %v1432 = vrot.slane %v1427, %v1431
      %v1433 = vadd.bf16 %v1393, %v1432
      %v1434 = vadd.bf16 %v1394, %v1432
      %v1435 = vadd.bf16 %v1395, %v1432
      %v1436 = vadd.bf16 %v1396, %v1432
      %v1437 = vadd.bf16 %v1397, %v1432
      %v1438 = vadd.bf16 %v1398, %v1432
      %v1439 = vadd.bf16 %v1399, %v1432
      %v1440 = vadd.bf16 %v1400, %v1432
      %v1441 = vadd.bf16 %v1401, %v1432
      %v1442 = vadd.bf16 %v1402, %v1432
      %v1443 = vadd.bf16 %v1403, %v1432
      %v1444 = vadd.bf16 %v1404, %v1432
      %v1445 = vadd.bf16 %v1405, %v1432
      %v1446 = vadd.bf16 %v1406, %v1432
      %v1447 = vadd.bf16 %v1407, %v1432
      %v1448 = vadd.bf16 %v1408, %v1432
      %v1449 = vadd.bf16 %v1409, %v1432
      %v1450 = vadd.bf16 %v1410, %v1432
      %v1451 = vadd.bf16 %v1411, %v1432
      %v1452 = vadd.bf16 %v1412, %v1432
      %v1453 = vadd.bf16 %v1413, %v1432
      %v1454 = vadd.bf16 %v1414, %v1432
      %v1455 = vadd.bf16 %v1415, %v1432
      %v1456 = vadd.bf16 %v1416, %v1432
      %v1457 = vadd.bf16 %v1417, %v1432
      %v1458 = vadd.bf16 %v1418, %v1432
      %v1459 = vadd.bf16 %v1419, %v1432
      %v1460 = vadd.bf16 %v1420, %v1432
      %v1461 = vadd.bf16 %v1421, %v1432
      %v1462 = vadd.bf16 %v1422, %v1432
      %v1463 = vadd.bf16 %v1423, %v1432
      %v1464 = vadd.bf16 %v1424, %v1432
      %v1465 = vmul.bf16 %v1433, 1045249613
      %v1466 = vmul.bf16 %v1434, 1045249613
      %v1467 = vmul.bf16 %v1435, 1045249613
      %v1468 = vmul.bf16 %v1436, 1045249613
      %v1469 = vmul.bf16 %v1437, 1045249613
      %v1470 = vmul.bf16 %v1438, 1045249613
      %v1471 = vmul.bf16 %v1439, 1045249613
      %v1472 = vmul.bf16 %v1440, 1045249613
      %v1473 = vmul.bf16 %v1441, 1045249613
      %v1474 = vmul.bf16 %v1442, 1045249613
      %v1475 = vmul.bf16 %v1443, 1045249613
      %v1476 = vmul.bf16 %v1444, 1045249613
      %v1477 = vmul.bf16 %v1445, 1045249613
      %v1478 = vmul.bf16 %v1446, 1045249613
      %v1479 = vmul.bf16 %v1447, 1045249613
      %v1480 = vmul.bf16 %v1448, 1045249613
      %v1481 = vmul.bf16 %v1449, 1045249613
      %v1482 = vmul.bf16 %v1450, 1045249613
      %v1483 = vmul.bf16 %v1451, 1045249613
      %v1484 = vmul.bf16 %v1452, 1045249613
      %v1485 = vmul.bf16 %v1453, 1045249613
      %v1486 = vmul.bf16 %v1454, 1045249613
      %v1487 = vmul.bf16 %v1455, 1045249613
      %v1488 = vmul.bf16 %v1456, 1045249613
      %v1489 = vmul.bf16 %v1457, 1045249613
      %v1490 = vmul.bf16 %v1458, 1045249613
      %v1491 = vmul.bf16 %v1459, 1045249613
      %v1492 = vmul.bf16 %v1460, 1045249613
      %v1493 = vmul.bf16 %v1461, 1045249613
      %v1494 = vmul.bf16 %v1462, 1045249613
      %v1495 = vmul.bf16 %v1463, 1045249613
      %v1496 = vmul.bf16 %v1464, 1045249613
      %v1497 = vmax.bf16 %v1433, %v1465
      %v1498 = vmax.bf16 %v1434, %v1466
      %v1499 = vmax.bf16 %v1435, %v1467
      %v1500 = vmax.bf16 %v1436, %v1468
      %v1501 = vmax.bf16 %v1437, %v1469
      %v1502 = vmax.bf16 %v1438, %v1470
      %v1503 = vmax.bf16 %v1439, %v1471
      %v1504 = vmax.bf16 %v1440, %v1472
      %v1505 = vmax.bf16 %v1441, %v1473
      %v1506 = vmax.bf16 %v1442, %v1474
      %v1507 = vmax.bf16 %v1443, %v1475
      %v1508 = vmax.bf16 %v1444, %v1476
      %v1509 = vmax.bf16 %v1445, %v1477
      %v1510 = vmax.bf16 %v1446, %v1478
      %v1511 = vmax.bf16 %v1447, %v1479
      %v1512 = vmax.bf16 %v1448, %v1480
      %v1513 = vmax.bf16 %v1449, %v1481
      %v1514 = vmax.bf16 %v1450, %v1482
      %v1515 = vmax.bf16 %v1451, %v1483
      %v1516 = vmax.bf16 %v1452, %v1484
      %v1517 = vmax.bf16 %v1453, %v1485
      %v1518 = vmax.bf16 %v1454, %v1486
      %v1519 = vmax.bf16 %v1455, %v1487
      %v1520 = vmax.bf16 %v1456, %v1488
      %v1521 = vmax.bf16 %v1457, %v1489
      %v1522 = vmax.bf16 %v1458, %v1490
      %v1523 = vmax.bf16 %v1459, %v1491
      %v1524 = vmax.bf16 %v1460, %v1492
      %v1525 = vmax.bf16 %v1461, %v1493
      %v1526 = vmax.bf16 %v1462, %v1494
      %v1527 = vmax.bf16 %v1463, %v1495
      %v1528 = vmax.bf16 %v1464, %v1496
      %v1561 = vunpack.c.l.b16 %v1497
      %v1562 = vunpack.c.h.b16 %v1497
      %v1563 = vunpack.c.l.b16 %v1498
      %v1564 = vunpack.c.h.b16 %v1498
      %v1565 = vunpack.c.l.b16 %v1499
      %v1566 = vunpack.c.h.b16 %v1499
      %v1567 = vunpack.c.l.b16 %v1500
      %v1568 = vunpack.c.h.b16 %v1500
      %v1569 = vunpack.c.l.b16 %v1501
      %v1570 = vunpack.c.h.b16 %v1501
      %v1571 = vunpack.c.l.b16 %v1502
      %v1572 = vunpack.c.h.b16 %v1502
      %v1573 = vunpack.c.l.b16 %v1503
      %v1574 = vunpack.c.h.b16 %v1503
      %v1575 = vunpack.c.l.b16 %v1504
      %v1576 = vunpack.c.h.b16 %v1504
      %v1577 = vunpack.c.l.b16 %v1505
      %v1578 = vunpack.c.h.b16 %v1505
      %v1579 = vunpack.c.l.b16 %v1506
      %v1580 = vunpack.c.h.b16 %v1506
      %v1581 = vunpack.c.l.b16 %v1507
      %v1582 = vunpack.c.h.b16 %v1507
      %v1583 = vunpack.c.l.b16 %v1508
      %v1584 = vunpack.c.h.b16 %v1508
      %v1585 = vunpack.c.l.b16 %v1509
      %v1586 = vunpack.c.h.b16 %v1509
      %v1587 = vunpack.c.l.b16 %v1510
      %v1588 = vunpack.c.h.b16 %v1510
      %v1589 = vunpack.c.l.b16 %v1511
      %v1590 = vunpack.c.h.b16 %v1511
      %v1591 = vunpack.c.l.b16 %v1512
      %v1592 = vunpack.c.h.b16 %v1512
      %v1593 = vunpack.c.l.b16 %v1513
      %v1594 = vunpack.c.h.b16 %v1513
      %v1595 = vunpack.c.l.b16 %v1514
      %v1596 = vunpack.c.h.b16 %v1514
      %v1597 = vunpack.c.l.b16 %v1515
      %v1598 = vunpack.c.h.b16 %v1515
      %v1599 = vunpack.c.l.b16 %v1516
      %v1600 = vunpack.c.h.b16 %v1516
      %v1601 = vunpack.c.l.b16 %v1517
      %v1602 = vunpack.c.h.b16 %v1517
      %v1603 = vunpack.c.l.b16 %v1518
      %v1604 = vunpack.c.h.b16 %v1518
      %v1605 = vunpack.c.l.b16 %v1519
      %v1606 = vunpack.c.h.b16 %v1519
      %v1607 = vunpack.c.l.b16 %v1520
      %v1608 = vunpack.c.h.b16 %v1520
      %v1609 = vunpack.c.l.b16 %v1521
      %v1610 = vunpack.c.h.b16 %v1521
      %v1611 = vunpack.c.l.b16 %v1522
      %v1612 = vunpack.c.h.b16 %v1522
      %v1613 = vunpack.c.l.b16 %v1523
      %v1614 = vunpack.c.h.b16 %v1523
      %v1615 = vunpack.c.l.b16 %v1524
      %v1616 = vunpack.c.h.b16 %v1524
      %v1617 = vunpack.c.l.b16 %v1525
      %v1618 = vunpack.c.h.b16 %v1525
      %v1619 = vunpack.c.l.b16 %v1526
      %v1620 = vunpack.c.h.b16 %v1526
      %v1621 = vunpack.c.l.b16 %v1527
      %v1622 = vunpack.c.h.b16 %v1527
      %v1623 = vunpack.c.l.b16 %v1528
      %v1624 = vunpack.c.h.b16 %v1528
      %v1625 = vpack.c.b16 %v1561, %v1561
      %v1626 = vpack.c.b16 %v1562, %v1562
      %v1627 = vpack.c.b16 %v1563, %v1563
      %v1628 = vpack.c.b16 %v1564, %v1564
      %v1629 = vpack.c.b16 %v1565, %v1565
      %v1630 = vpack.c.b16 %v1566, %v1566
      %v1631 = vpack.c.b16 %v1567, %v1567
      %v1632 = vpack.c.b16 %v1568, %v1568
      %v1633 = vpack.c.b16 %v1569, %v1569
      %v1634 = vpack.c.b16 %v1570, %v1570
      %v1635 = vpack.c.b16 %v1571, %v1571
      %v1636 = vpack.c.b16 %v1572, %v1572
      %v1637 = vpack.c.b16 %v1573, %v1573
      %v1638 = vpack.c.b16 %v1574, %v1574
      %v1639 = vpack.c.b16 %v1575, %v1575
      %v1640 = vpack.c.b16 %v1576, %v1576
      %v1641 = vpack.c.b16 %v1577, %v1577
      %v1642 = vpack.c.b16 %v1578, %v1578
      %v1643 = vpack.c.b16 %v1579, %v1579
      %v1644 = vpack.c.b16 %v1580, %v1580
      %v1645 = vpack.c.b16 %v1581, %v1581
      %v1646 = vpack.c.b16 %v1582, %v1582
      %v1647 = vpack.c.b16 %v1583, %v1583
      %v1648 = vpack.c.b16 %v1584, %v1584
      %v1649 = vpack.c.b16 %v1585, %v1585
      %v1650 = vpack.c.b16 %v1586, %v1586
      %v1651 = vpack.c.b16 %v1587, %v1587
      %v1652 = vpack.c.b16 %v1588, %v1588
      %v1653 = vpack.c.b16 %v1589, %v1589
      %v1654 = vpack.c.b16 %v1590, %v1590
      %v1655 = vpack.c.b16 %v1591, %v1591
      %v1656 = vpack.c.b16 %v1592, %v1592
      %v1657 = vpack.c.b16 %v1593, %v1593
      %v1658 = vpack.c.b16 %v1594, %v1594
      %v1659 = vpack.c.b16 %v1595, %v1595
      %v1660 = vpack.c.b16 %v1596, %v1596
      %v1661 = vpack.c.b16 %v1597, %v1597
      %v1662 = vpack.c.b16 %v1598, %v1598
      %v1663 = vpack.c.b16 %v1599, %v1599
      %v1664 = vpack.c.b16 %v1600, %v1600
      %v1665 = vpack.c.b16 %v1601, %v1601
      %v1666 = vpack.c.b16 %v1602, %v1602
      %v1667 = vpack.c.b16 %v1603, %v1603
      %v1668 = vpack.c.b16 %v1604, %v1604
      %v1669 = vpack.c.b16 %v1605, %v1605
      %v1670 = vpack.c.b16 %v1606, %v1606
      %v1671 = vpack.c.b16 %v1607, %v1607
      %v1672 = vpack.c.b16 %v1608, %v1608
      %v1673 = vpack.c.b16 %v1609, %v1609
      %v1674 = vpack.c.b16 %v1610, %v1610
      %v1675 = vpack.c.b16 %v1611, %v1611
      %v1676 = vpack.c.b16 %v1612, %v1612
      %v1677 = vpack.c.b16 %v1613, %v1613
      %v1678 = vpack.c.b16 %v1614, %v1614
      %v1679 = vpack.c.b16 %v1615, %v1615
      %v1680 = vpack.c.b16 %v1616, %v1616
      %v1681 = vpack.c.b16 %v1617, %v1617
      %v1682 = vpack.c.b16 %v1618, %v1618
      %v1683 = vpack.c.b16 %v1619, %v1619
      %v1684 = vpack.c.b16 %v1620, %v1620
      %v1685 = vpack.c.b16 %v1621, %v1621
      %v1686 = vpack.c.b16 %v1622, %v1622
      %v1687 = vpack.c.b16 %v1623, %v1623
      %v1688 = vpack.c.b16 %v1624, %v1624
      %1753 = vst [vmem:[%s282] sm:$0xf] %v1625
      %1754 = vst [vmem:[%s282 + $0x4] sm:$0xf] %v1626
      %1755 = vst [vmem:[%s282 + $0x8] sm:$0xf] %v1627
      %1756 = vst [vmem:[%s282 + $0xc] sm:$0xf] %v1628
      %1757 = vst [vmem:[%s282 + $0x10] sm:$0xf] %v1629
      %1758 = vst [vmem:[%s282 + $0x14] sm:$0xf] %v1630
      %1759 = vst [vmem:[%s282 + $0x18] sm:$0xf] %v1631
      %1760 = vst [vmem:[%s282 + $0x1c] sm:$0xf] %v1632
      %1761 = vst [vmem:[%s282 + $0x20] sm:$0xf] %v1633
      %1762 = vst [vmem:[%s282 + $0x24] sm:$0xf] %v1634
      %1763 = vst [vmem:[%s282 + $0x28] sm:$0xf] %v1635
      %1764 = vst [vmem:[%s282 + $0x2c] sm:$0xf] %v1636
      %1765 = vst [vmem:[%s282 + $0x30] sm:$0xf] %v1637
      %1766 = vst [vmem:[%s282 + $0x34] sm:$0xf] %v1638
      %1767 = vst [vmem:[%s282 + $0x38] sm:$0xf] %v1639
      %1768 = vst [vmem:[%s282 + $0x3c] sm:$0xf] %v1640
      %1769 = vst [vmem:[%s282 + $0x40] sm:$0xf] %v1641
      %1770 = vst [vmem:[%s282 + $0x44] sm:$0xf] %v1642
      %1771 = vst [vmem:[%s282 + $0x48] sm:$0xf] %v1643
      %1772 = vst [vmem:[%s282 + $0x4c] sm:$0xf] %v1644
      %1773 = vst [vmem:[%s282 + $0x50] sm:$0xf] %v1645
      %1774 = vst [vmem:[%s282 + $0x54] sm:$0xf] %v1646
      %1775 = vst [vmem:[%s282 + $0x58] sm:$0xf] %v1647
      %1776 = vst [vmem:[%s282 + $0x5c] sm:$0xf] %v1648
      %1777 = vst [vmem:[%s282 + $0x60] sm:$0xf] %v1649
      %1778 = vst [vmem:[%s282 + $0x64] sm:$0xf] %v1650
      %1779 = vst [vmem:[%s282 + $0x68] sm:$0xf] %v1651
      %1780 = vst [vmem:[%s282 + $0x6c] sm:$0xf] %v1652
      %1781 = vst [vmem:[%s282 + $0x70] sm:$0xf] %v1653
      %1782 = vst [vmem:[%s282 + $0x74] sm:$0xf] %v1654
      %1783 = vst [vmem:[%s282 + $0x78] sm:$0xf] %v1655
      %1784 = vst [vmem:[%s282 + $0x7c] sm:$0xf] %v1656
      %1785 = vst [vmem:[%s282 + $0x80] sm:$0xf] %v1657
      %1786 = vst [vmem:[%s282 + $0x84] sm:$0xf] %v1658
      %1787 = vst [vmem:[%s282 + $0x88] sm:$0xf] %v1659
      %1788 = vst [vmem:[%s282 + $0x8c] sm:$0xf] %v1660
      %1789 = vst [vmem:[%s282 + $0x90] sm:$0xf] %v1661
      %1790 = vst [vmem:[%s282 + $0x94] sm:$0xf] %v1662
      %1791 = vst [vmem:[%s282 + $0x98] sm:$0xf] %v1663
      %1792 = vst [vmem:[%s282 + $0x9c] sm:$0xf] %v1664
      %1793 = vst [vmem:[%s282 + $0xa0] sm:$0xf] %v1665
      %1794 = vst [vmem:[%s282 + $0xa4] sm:$0xf] %v1666
      %1795 = vst [vmem:[%s282 + $0xa8] sm:$0xf] %v1667
      %1796 = vst [vmem:[%s282 + $0xac] sm:$0xf] %v1668
      %1797 = vst [vmem:[%s282 + $0xb0] sm:$0xf] %v1669
      %1798 = vst [vmem:[%s282 + $0xb4] sm:$0xf] %v1670
      %1799 = vst [vmem:[%s282 + $0xb8] sm:$0xf] %v1671
      %1800 = vst [vmem:[%s282 + $0xbc] sm:$0xf] %v1672
      %1801 = vst [vmem:[%s282 + $0xc0] sm:$0xf] %v1673
      %1802 = vst [vmem:[%s282 + $0xc4] sm:$0xf] %v1674
      %1803 = vst [vmem:[%s282 + $0xc8] sm:$0xf] %v1675
      %1804 = vst [vmem:[%s282 + $0xcc] sm:$0xf] %v1676
      %1805 = vst [vmem:[%s282 + $0xd0] sm:$0xf] %v1677
      %1806 = vst [vmem:[%s282 + $0xd4] sm:$0xf] %v1678
      %1807 = vst [vmem:[%s282 + $0xd8] sm:$0xf] %v1679
      %1808 = vst [vmem:[%s282 + $0xdc] sm:$0xf] %v1680
      %1809 = vst [vmem:[%s282 + $0xe0] sm:$0xf] %v1681
      %1810 = vst [vmem:[%s282 + $0xe4] sm:$0xf] %v1682
      %1811 = vst [vmem:[%s282 + $0xe8] sm:$0xf] %v1683
      %1812 = vst [vmem:[%s282 + $0xec] sm:$0xf] %v1684
      %1813 = vst [vmem:[%s282 + $0xf0] sm:$0xf] %v1685
      %1814 = vst [vmem:[%s282 + $0xf4] sm:$0xf] %v1686
      %1815 = vst [vmem:[%s282 + $0xf8] sm:$0xf] %v1687
      %1816 = vst [vmem:[%s282 + $0xfc] sm:$0xf] %v1688
      %s1817 = smul.u32 64, %s21
      %p1818 = scmp.lt.s32.totalorder %s20, 3
      %s1819 = scalar_select %p1818, %s20, 3
      %p1820 = scmp.lt.s32.totalorder %s1817, 63
      %s1821 = scalar_select %p1820, %s1817, 63
      %s1822 = smul.addr %s1819, 64
      %s1823 = sadd.s32 %s1821, %s1822
      %s1824 = smul.addr %s1823, 4
      %s1825 = scalar_lea.vmem %s5, %s1824
      // Predicated region
      $region41: #{conv_trans_bn_conv1.1} parent=39 // pred_check
        %p1826 = pneg %p165
      $region42: #{conv_trans_bn_conv1.1} parent=39 // pred_check_branch
        %1828 = sbr.rel (%p1826) target = $region44
      $region43: #{conv_trans_bn_conv1.1} parent=39 // pred_region
        %s1829 = smul.u32 64, %s21
      $region44: #{conv_trans_bn_conv1.1} parent=39 // pred_fallthru
        _
    $region40: #{conv_trans_bn_conv1.1} parent=5 // pred_fallthru
      _
    %p1830 = scmp.le.s32.totalorder 2, %s11
    // Predicated region
    $region45: #{conv_trans_bn_conv1.1} parent=5 // pred_check
      %p1831 = pneg %p1830
    $region46: #{conv_trans_bn_conv1.1} parent=5 // pred_check_branch
      %1833 = sbr.rel (%p1831) target = $region48
    $region47: #{conv_trans_bn_conv1.1} parent=5 // pred_region
      %s1834 = ssub.s32 %s11, 2
      // Predicated region
      $region49: #{conv_trans_bn_conv1.1} parent=47 // pred_check
        %p1835 = pneg %p171
      $region50: #{conv_trans_bn_conv1.1} parent=47 // pred_check_branch
        %1837 = sbr.rel (%p1835) target = $region52
      $region51: #{conv_trans_bn_conv1.1} parent=47 // pred_region
        %s1838 = smul.u32 64, %s23
        %p1839 = scmp.lt.s32.totalorder %s22, 3
        %s1840 = scalar_select %p1839, %s22, 3
        %p1841 = scmp.lt.s32.totalorder %s1838, 63
        %s1842 = scalar_select %p1841, %s1838, 63
        %s1843 = smul.addr %s1840, 64
        %s1844 = sadd.s32 %s1842, %s1843
        %s1845 = smul.addr %s1844, 4
        %s1846 = scalar_lea.vmem %s5, %s1845
      $region52: #{conv_trans_bn_conv1.1} parent=47 // pred_fallthru
        _
    $region48: #{conv_trans_bn_conv1.1} parent=5 // pred_fallthru
      _
  $region6: #{conv_trans_bn_conv1.1} parent=0 // loop_footer
    %s15 = sadd.s32 1, %s11
  $region7: #{conv_trans_bn_conv1.1} parent=0 // loop_footer_branch
    %10 = sbr.rel target = $region3
  $region8: #{conv_trans_bn_conv1.1} parent=0 // loop_exit
    _

</llo_original>
